<compile_context>
chip_gen: v5e
topology: v5e:2x2
jax: 0.10.0
libtpu: 0.0.40
codegen_flags: <defaults>
</compile_context>

<pallas_src>
import jax
import jax.numpy as jnp
from jax.experimental import pallas as pl
from jax.experimental.pallas import tpu as pltpu

EPS = 1e-5


# ----------------------------- kernel helpers ------------------------------

def _shift_rows(x, d):
    """result[h] = x[h + d] along axis 0, zero-filled out of range (static d)."""
    if d == 0:
        return x
    z = jnp.zeros((abs(d), x.shape[1]), x.dtype)
    if d > 0:
        return jnp.concatenate([x[d:], z], axis=0)
    return jnp.concatenate([z, x[:d]], axis=0)


def _conv3x3_banded(x_bf16, m_ref):
    """3x3 'same' conv on one image in lane-dense (H, W*Cin) layout.

    m_ref holds three banded (W*Cin, W*Cout) matrices, one per kh tap; the kw
    taps and the W-boundary zero padding are encoded in the band structure,
    the kh taps are sublane row shifts of the input.  f32 accumulation,
    single-pass bf16 MXU (default precision).
    """
    acc = jnp.dot(x_bf16, m_ref[1], preferred_element_type=jnp.float32)
    acc = acc + jnp.dot(_shift_rows(x_bf16, -1), m_ref[0],
                        preferred_element_type=jnp.float32)
    acc = acc + jnp.dot(_shift_rows(x_bf16, 1), m_ref[2],
                        preferred_element_type=jnp.float32)
    return acc


def _partial_stats(y_f32):
    """Per lane position (w*C + c): partial [sum, sum_sq] over the H rows."""
    s1 = jnp.sum(y_f32, axis=0, keepdims=True)
    s2 = jnp.sum(y_f32 * y_f32, axis=0, keepdims=True)
    return jnp.concatenate([s1, s2], axis=0)


# --------------------------------- kernels ---------------------------------

def _conv1_kernel(x_ref, m_ref, y_ref, st_ref):
    # x_ref: (1, H, W*Cin) f32   m_ref: (3, W*Cin, W*Cout) bf16
    # y_ref: (1, H, W*Cout) bf16 (raw conv1 output)   st_ref: (1, 2, W*Cout) f32
    x = x_ref[0].astype(jnp.bfloat16)
    acc = _conv3x3_banded(x, m_ref)                 # no conv bias: BN cancels it
    y = acc.astype(jnp.bfloat16)
    y_ref[0] = y
    st_ref[0] = _partial_stats(y.astype(jnp.float32))


def _bn_relu_conv2_kernel(y1_ref, sc_ref, sh_ref, m_ref, y2_ref, st_ref):
    # bn1 (per-position affine, f32) + relu, then conv2; emits raw conv2
    # output and its partial BN2 statistics.
    h = jnp.maximum(y1_ref[0].astype(jnp.float32) * sc_ref[...] + sh_ref[...], 0.0)
    acc = _conv3x3_banded(h.astype(jnp.bfloat16), m_ref)
    y = acc.astype(jnp.bfloat16)
    y2_ref[0] = y
    st_ref[0] = _partial_stats(y.astype(jnp.float32))


def _bn2_add_relu_kernel(y2_ref, x_ref, sc_ref, sh_ref, o_ref):
    # bn2 + identity residual + relu, all lane-dense f32 element-wise work.
    o_ref[0] = jnp.maximum(
        y2_ref[0].astype(jnp.float32) * sc_ref[...] + sh_ref[...] + x_ref[0], 0.0)


# -------------------------------- wrapper -----------------------------------

def _banded_weights(w_hwio, width):
    """Fold the 3 kw taps + zero padding of a 3x3 kernel into three banded
    (W*Cin, W*Cout) matrices (one per kh tap), cast to bf16 for the MXU."""
    mats = []
    for kh in range(3):
        m = 0.0
        for kw in range(3):
            band = jnp.eye(width, k=-(kw - 1), dtype=jnp.float32)
            m = m + jnp.kron(band, w_hwio[kh, kw].astype(jnp.float32))
        mats.append(m)
    return jnp.stack(mats).astype(jnp.bfloat16)


def _bn_affine_from_partials(partials, gamma, beta, count, width, channels):
    """Finalize training-mode BN from per-image partial sums.

    Returns per-lane-position (1, W*C) scale/shift so the kernels apply BN as
    a single fused multiply-add.  Uses the single-pass E[x^2]-E[x]^2 variance
    (fine at these magnitudes with eps=1e-5); biased variance as in PyTorch.
    """
    s = jnp.sum(partials, axis=0)                      # (2, W*C)
    s = s.reshape(2, width, channels).sum(axis=1)      # (2, C)
    mean = s[0] / count
    var = s[1] / count - mean * mean
    scale = gamma * jax.lax.rsqrt(var + EPS)
    shift = beta - mean * scale
    scale_t = jnp.tile(scale, width).reshape(1, width * channels)
    shift_t = jnp.tile(shift, width).reshape(1, width * channels)
    return scale_t, shift_t


def basic_block_forward(x_nchw, params):
    """NCHW in / NCHW out.  Conv biases b1/b2 are ignored: they are exactly
    cancelled by the training-mode BatchNorm that follows each conv."""
    w1, _b1, g1, be1, w2, _b2, g2, be2 = params
    n, cin, h, w = x_nchw.shape
    cout = w1.shape[-1]
    assert cin == cout, "identity residual requires in_channels == out_channels"
    wc_in, wc_out = w * cin, w * cout

    # Lane-dense NHWC view: (N, H, W*C) so the last (lane) dim is W*C (=128 here).
    x = jnp.transpose(x_nchw, (0, 2, 3, 1)).astype(jnp.float32).reshape(n, h, wc_in)
    m1 = _banded_weights(w1, w)          # (3, W*Cin,  W*Cout) bf16
    m2 = _banded_weights(w2, w)          # (3, W*Cout, W*Cout) bf16

    parallel = pltpu.CompilerParams(dimension_semantics=("parallel",))
    img_spec = lambda lanes: pl.BlockSpec((1, h, lanes), lambda i: (i, 0, 0))
    full_spec = lambda shape: pl.BlockSpec(shape, lambda i: (0,) * len(shape))
    st_spec = pl.BlockSpec((1, 2, wc_out), lambda i: (i, 0, 0))

    # Pass 1: conv1 (no bias) + per-image BN1 partial stats.
    y1, st1 = pl.pallas_call(
        _conv1_kernel,
        grid=(n,),
        in_specs=[img_spec(wc_in), full_spec((3, wc_in, wc_out))],
        out_specs=(img_spec(wc_out), st_spec),
        out_shape=(jax.ShapeDtypeStruct((n, h, wc_out), jnp.bfloat16),
                   jax.ShapeDtypeStruct((n, 2, wc_out), jnp.float32)),
        compiler_params=parallel,
    )(x, m1)
    sc1, sh1 = _bn_affine_from_partials(st1, g1, be1, n * h * w, w, cout)

    # Pass 2: bn1 + relu + conv2 (no bias) + per-image BN2 partial stats.
    y2, st2 = pl.pallas_call(
        _bn_relu_conv2_kernel,
        grid=(n,),
        in_specs=[img_spec(wc_out), full_spec((1, wc_out)), full_spec((1, wc_out)),
                  full_spec((3, wc_out, wc_out))],
        out_specs=(img_spec(wc_out), st_spec),
        out_shape=(jax.ShapeDtypeStruct((n, h, wc_out), jnp.bfloat16),
                   jax.ShapeDtypeStruct((n, 2, wc_out), jnp.float32)),
        compiler_params=parallel,
    )(y1, sc1, sh1, m2)
    sc2, sh2 = _bn_affine_from_partials(st2, g2, be2, n * h * w, w, cout)

    # Pass 3: bn2 + identity residual + relu.
    out = pl.pallas_call(
        _bn2_add_relu_kernel,
        grid=(n,),
        in_specs=[img_spec(wc_out), img_spec(wc_in), full_spec((1, wc_out)),
                  full_spec((1, wc_out))],
        out_specs=img_spec(wc_out),
        out_shape=jax.ShapeDtypeStruct((n, h, wc_out), jnp.float32),
        compiler_params=parallel,
    )(y2, x, sc2, sh2)

    return jnp.transpose(out.reshape(n, h, w, cout), (0, 3, 1, 2))


# ----------------------------- params & reference ---------------------------

def init_params(key, in_channels, out_channels):
    """Deterministic synthetic parameters (shapes match the nn.Module)."""
    ks = jax.random.split(key, 6)
    w1 = 0.1 * jax.random.normal(ks[0], (3, 3, in_channels, out_channels), jnp.float32)
    b1 = 0.05 * jax.random.normal(ks[1], (out_channels,), jnp.float32)
    w2 = 0.1 * jax.random.normal(ks[2], (3, 3, out_channels, out_channels), jnp.float32)
    b2 = 0.05 * jax.random.normal(ks[3], (out_channels,), jnp.float32)
    g1 = 1.0 + 0.1 * jax.random.normal(ks[4], (out_channels,), jnp.float32)
    be1 = 0.1 * jax.random.normal(ks[5], (out_channels,), jnp.float32)
    g2 = 1.0 + 0.05 * jnp.cos(jnp.arange(out_channels, dtype=jnp.float32))
    be2 = 0.05 * jnp.sin(jnp.arange(out_channels, dtype=jnp.float32))
    return (w1, b1, g1, be1, w2, b2, g2, be2)


def reference_forward(x_nchw, params):
    """Pure-JAX f32/HIGHEST reference (mirrors the PyTorch module's forward,
    including the conv biases that the Pallas path drops)."""
    w1, b1, g1, be1, w2, b2, g2, be2 = params

    def conv(x, w, b):
        w_oihw = jnp.transpose(w, (3, 2, 0, 1))
        y = jax.lax.conv_general_dilated(
            x, w_oihw, window_strides=(1, 1), padding=((1, 1), (1, 1)),
            dimension_numbers=("NCHW", "OIHW", "NCHW"),
            precision=jax.lax.Precision.HIGHEST)
        return y + b[None, :, None, None]

    def bn(x, g, be):
        mean = jnp.mean(x, axis=(0, 2, 3), keepdims=True)
        var = jnp.mean((x - mean) ** 2, axis=(0, 2, 3), keepdims=True)
        return ((x - mean) * jax.lax.rsqrt(var + EPS)
                * g[None, :, None, None] + be[None, :, None, None])

    h = jax.nn.relu(bn(conv(x_nchw, w1, b1), g1, be1))
    h = bn(conv(h, w2, b2), g2, be2)
    return jax.nn.relu(h + x_nchw)


if __name__ == "__main__":
    N, C, H, W = 2, 8, 16, 16          # in_channels == out_channels, stride 1
    key = jax.random.PRNGKey(0)
    kx, kp = jax.random.split(key)
    x = jax.random.normal(kx, (N, C, H, W), jnp.float32)
    params = init_params(kp, C, C)

    fwd = jax.jit(basic_block_forward)
    out = jax.block_until_ready(fwd(x, params))

    ref = jax.block_until_ready(reference_forward(x, params))
    max_err = float(jnp.max(jnp.abs(out - ref)))
    assert out.shape == (N, C, H, W), out.shape
    # Kernel uses single-pass bf16 MXU operands + bf16 intermediates; compare
    # against the f32/HIGHEST reference with a correspondingly relaxed bound.
    assert max_err < 5e-2, f"mismatch vs reference: {max_err}"

    print("KERNEL_OK")
</pallas_src>

<mosaic_0001>
module attributes {stable_mosaic.version = 11 : i64} {
  func.func @_conv1_kernel(%arg0: i32, %arg1: memref<1x16x128xf32, #tpu.memory_space<vmem>>, %arg2: memref<3x128x128xbf16, #tpu.memory_space<vmem>>, %arg3: memref<1x16x128xbf16, #tpu.memory_space<vmem>>, %arg4: memref<1x2x128xf32, #tpu.memory_space<vmem>>) attributes {dimension_semantics = [#tpu.dimension_semantics<parallel>], iteration_bounds = array<i64: 2>, scalar_prefetch = 0 : i64, scratch_operands = 0 : i64, tpu.core_type = #tpu.core_type<tc>, window_params = [{transform_indices = @transform_0, window_bounds = array<i64: 1, 16, 128>}, {pipeline_mode = #tpu.pipeline_mode<synchronous>, transform_indices = @transform_1, window_bounds = array<i64: 3, 128, 128>}, {transform_indices = @transform_2, window_bounds = array<i64: 1, 16, 128>}, {transform_indices = @transform_3, window_bounds = array<i64: 1, 2, 128>}]} {
    %c0 = arith.constant 0 : index
    %c0_0 = arith.constant 0 : index
    %c0_1 = arith.constant 0 : index
    %0 = vector.load %arg1[%c0, %c0_0, %c0_1] : memref<1x16x128xf32, #tpu.memory_space<vmem>>, vector<1x16x128xf32>
    %1 = vector.shape_cast %0 : vector<1x16x128xf32> to vector<16x128xf32>
    %2 = arith.truncf %1 : vector<16x128xf32> to vector<16x128xbf16>
    %c1 = arith.constant 1 : index
    %c0_2 = arith.constant 0 : index
    %c0_3 = arith.constant 0 : index
    %3 = vector.load %arg2[%c1, %c0_2, %c0_3] : memref<3x128x128xbf16, #tpu.memory_space<vmem>>, vector<1x128x128xbf16>
    %4 = vector.shape_cast %3 : vector<1x128x128xbf16> to vector<128x128xbf16>
    %cst = arith.constant dense<0.000000e+00> : vector<16x128xf32>
    %5 = tpu.matmul %2, %4, %cst {dimension_numbers = #tpu.dot_dimension_numbers<[1], [0], [0], [1], [0, 0, 1, 1], [], []>} : vector<16x128xbf16>, vector<128x128xbf16>, vector<16x128xf32> -> vector<16x128xf32>
    %cst_4 = arith.constant 0.000000e+00 : bf16
    %6 = vector.broadcast %cst_4 : bf16 to vector<1x128xbf16>
    %7 = vector.extract_strided_slice %2 {offsets = [0, 0], sizes = [15, 128], strides = [1, 1]} : vector<16x128xbf16> to vector<15x128xbf16>
    %8 = tpu.concatenate %6, %7 in 0 : vector<1x128xbf16>, vector<15x128xbf16> -> vector<16x128xbf16>
    %c0_5 = arith.constant 0 : index
    %c0_6 = arith.constant 0 : index
    %c0_7 = arith.constant 0 : index
    %9 = vector.load %arg2[%c0_5, %c0_6, %c0_7] : memref<3x128x128xbf16, #tpu.memory_space<vmem>>, vector<1x128x128xbf16>
    %10 = vector.shape_cast %9 : vector<1x128x128xbf16> to vector<128x128xbf16>
    %cst_8 = arith.constant dense<0.000000e+00> : vector<16x128xf32>
    %11 = tpu.matmul %8, %10, %cst_8 {dimension_numbers = #tpu.dot_dimension_numbers<[1], [0], [0], [1], [0, 0, 1, 1], [], []>} : vector<16x128xbf16>, vector<128x128xbf16>, vector<16x128xf32> -> vector<16x128xf32>
    %12 = arith.addf %5, %11 : vector<16x128xf32>
    %cst_9 = arith.constant 0.000000e+00 : bf16
    %13 = vector.broadcast %cst_9 : bf16 to vector<1x128xbf16>
    %14 = vector.extract_strided_slice %2 {offsets = [1, 0], sizes = [15, 128], strides = [1, 1]} : vector<16x128xbf16> to vector<15x128xbf16>
    %15 = tpu.concatenate %14, %13 in 0 : vector<15x128xbf16>, vector<1x128xbf16> -> vector<16x128xbf16>
    %c2 = arith.constant 2 : index
    %c0_10 = arith.constant 0 : index
    %c0_11 = arith.constant 0 : index
    %16 = vector.load %arg2[%c2, %c0_10, %c0_11] : memref<3x128x128xbf16, #tpu.memory_space<vmem>>, vector<1x128x128xbf16>
    %17 = vector.shape_cast %16 : vector<1x128x128xbf16> to vector<128x128xbf16>
    %cst_12 = arith.constant dense<0.000000e+00> : vector<16x128xf32>
    %18 = tpu.matmul %15, %17, %cst_12 {dimension_numbers = #tpu.dot_dimension_numbers<[1], [0], [0], [1], [0, 0, 1, 1], [], []>} : vector<16x128xbf16>, vector<128x128xbf16>, vector<16x128xf32> -> vector<16x128xf32>
    %19 = arith.addf %12, %18 : vector<16x128xf32>
    %20 = arith.truncf %19 : vector<16x128xf32> to vector<16x128xbf16>
    %c0_13 = arith.constant 0 : index
    %c0_14 = arith.constant 0 : index
    %c0_15 = arith.constant 0 : index
    %21 = vector.load %arg3[%c0_13, %c0_14, %c0_15] : memref<1x16x128xbf16, #tpu.memory_space<vmem>>, vector<1x16x128xbf16>
    %22 = vector.shape_cast %21 : vector<1x16x128xbf16> to vector<16x128xbf16>
    %23 = vector.shape_cast %20 : vector<16x128xbf16> to vector<1x16x128xbf16>
    tpu.vector_store %arg3[%c0_13, %c0_14, %c0_15], %23 {strides = array<i32>} : memref<1x16x128xbf16, #tpu.memory_space<vmem>>, vector<1x16x128xbf16>,
    %24 = arith.extf %20 : vector<16x128xbf16> to vector<16x128xf32>
    %cst_16 = arith.constant dense<0.000000e+00> : vector<128xf32>
    %25 = vector.multi_reduction <add>, %24, %cst_16 [0] : vector<16x128xf32> to vector<128xf32>
    %26 = vector.shape_cast %25 : vector<128xf32> to vector<1x128xf32>
    %27 = arith.mulf %24, %24 : vector<16x128xf32>
    %cst_17 = arith.constant dense<0.000000e+00> : vector<128xf32>
    %28 = vector.multi_reduction <add>, %27, %cst_17 [0] : vector<16x128xf32> to vector<128xf32>
    %29 = vector.shape_cast %28 : vector<128xf32> to vector<1x128xf32>
    %30 = tpu.concatenate %26, %29 in 0 : vector<1x128xf32>, vector<1x128xf32> -> vector<2x128xf32>
    %c0_18 = arith.constant 0 : index
    %c0_19 = arith.constant 0 : index
    %c0_20 = arith.constant 0 : index
    %31 = vector.load %arg4[%c0_18, %c0_19, %c0_20] : memref<1x2x128xf32, #tpu.memory_space<vmem>>, vector<1x2x128xf32>
    %32 = vector.shape_cast %31 : vector<1x2x128xf32> to vector<2x128xf32>
    %33 = vector.shape_cast %30 : vector<2x128xf32> to vector<1x2x128xf32>
    tpu.vector_store %arg4[%c0_18, %c0_19, %c0_20], %33 {strides = array<i32>} : memref<1x2x128xf32, #tpu.memory_space<vmem>>, vector<1x2x128xf32>,
    return
  }
  func.func @transform_0(%arg0: i32) -> (i32, i32, i32) {
    %c0_i32 = arith.constant 0 : i32
    %c0_i32_0 = arith.constant 0 : i32
    %c0_i32_1 = arith.constant 0 : i32
    return %arg0, %c0_i32, %c0_i32_0 : i32, i32, i32
  }
  func.func @transform_1(%arg0: i32) -> (i32, i32, i32) {
    %c0_i32 = arith.constant 0 : i32
    %c0_i32_0 = arith.constant 0 : i32
    %c0_i32_1 = arith.constant 0 : i32
    %c0_i32_2 = arith.constant 0 : i32
    return %c0_i32, %c0_i32_0, %c0_i32_1 : i32, i32, i32
  }
  func.func @transform_2(%arg0: i32) -> (i32, i32, i32) {
    %c0_i32 = arith.constant 0 : i32
    %c0_i32_0 = arith.constant 0 : i32
    %c0_i32_1 = arith.constant 0 : i32
    return %arg0, %c0_i32, %c0_i32_0 : i32, i32, i32
  }
  func.func @transform_3(%arg0: i32) -> (i32, i32, i32) {
    %c0_i32 = arith.constant 0 : i32
    %c0_i32_0 = arith.constant 0 : i32
    %c0_i32_1 = arith.constant 0 : i32
    return %arg0, %c0_i32, %c0_i32_0 : i32, i32, i32
  }
}

module attributes {stable_mosaic.version = 11 : i64} {
  func.func @_bn2_add_relu_kernel(%arg0: i32, %arg1: memref<1x16x128xbf16, #tpu.memory_space<vmem>>, %arg2: memref<1x16x128xf32, #tpu.memory_space<vmem>>, %arg3: memref<1x128xf32, #tpu.memory_space<vmem>>, %arg4: memref<1x128xf32, #tpu.memory_space<vmem>>, %arg5: memref<1x16x128xf32, #tpu.memory_space<vmem>>) attributes {dimension_semantics = [#tpu.dimension_semantics<parallel>], iteration_bounds = array<i64: 2>, scalar_prefetch = 0 : i64, scratch_operands = 0 : i64, tpu.core_type = #tpu.core_type<tc>, window_params = [{transform_indices = @transform_0, window_bounds = array<i64: 1, 16, 128>}, {transform_indices = @transform_1, window_bounds = array<i64: 1, 16, 128>}, {pipeline_mode = #tpu.pipeline_mode<synchronous>, transform_indices = @transform_2, window_bounds = array<i64: 1, 128>}, {pipeline_mode = #tpu.pipeline_mode<synchronous>, transform_indices = @transform_3, window_bounds = array<i64: 1, 128>}, {transform_indices = @transform_4, window_bounds = array<i64: 1, 16, 128>}]} {
    %c0 = arith.constant 0 : index
    %c0_0 = arith.constant 0 : index
    %c0_1 = arith.constant 0 : index
    %0 = vector.load %arg1[%c0, %c0_0, %c0_1] : memref<1x16x128xbf16, #tpu.memory_space<vmem>>, vector<1x16x128xbf16>
    %1 = vector.shape_cast %0 : vector<1x16x128xbf16> to vector<16x128xbf16>
    %2 = arith.extf %1 : vector<16x128xbf16> to vector<16x128xf32>
    %c0_2 = arith.constant 0 : index
    %c0_3 = arith.constant 0 : index
    %3 = vector.load %arg3[%c0_2, %c0_3] : memref<1x128xf32, #tpu.memory_space<vmem>>, vector<1x128xf32>
    %4 = vector.broadcast %3 : vector<1x128xf32> to vector<16x128xf32>
    %5 = arith.mulf %2, %4 : vector<16x128xf32>
    %c0_4 = arith.constant 0 : index
    %c0_5 = arith.constant 0 : index
    %6 = vector.load %arg4[%c0_4, %c0_5] : memref<1x128xf32, #tpu.memory_space<vmem>>, vector<1x128xf32>
    %7 = vector.broadcast %6 : vector<1x128xf32> to vector<16x128xf32>
    %8 = arith.addf %5, %7 : vector<16x128xf32>
    %c0_6 = arith.constant 0 : index
    %c0_7 = arith.constant 0 : index
    %c0_8 = arith.constant 0 : index
    %9 = vector.load %arg2[%c0_6, %c0_7, %c0_8] : memref<1x16x128xf32, #tpu.memory_space<vmem>>, vector<1x16x128xf32>
    %10 = vector.shape_cast %9 : vector<1x16x128xf32> to vector<16x128xf32>
    %11 = arith.addf %8, %10 : vector<16x128xf32>
    %cst = arith.constant 0.000000e+00 : f32
    %12 = vector.broadcast %cst : f32 to vector<16x128xf32>
    %13 = arith.maximumf %11, %12 : vector<16x128xf32>
    %c0_9 = arith.constant 0 : index
    %c0_10 = arith.constant 0 : index
    %c0_11 = arith.constant 0 : index
    %14 = vector.load %arg5[%c0_9, %c0_10, %c0_11] : memref<1x16x128xf32, #tpu.memory_space<vmem>>, vector<1x16x128xf32>
    %15 = vector.shape_cast %14 : vector<1x16x128xf32> to vector<16x128xf32>
    %16 = vector.shape_cast %13 : vector<16x128xf32> to vector<1x16x128xf32>
    tpu.vector_store %arg5[%c0_9, %c0_10, %c0_11], %16 {strides = array<i32>} : memref<1x16x128xf32, #tpu.memory_space<vmem>>, vector<1x16x128xf32>,
    return
  }
  func.func @transform_0(%arg0: i32) -> (i32, i32, i32) {
    %c0_i32 = arith.constant 0 : i32
    %c0_i32_0 = arith.constant 0 : i32
    %c0_i32_1 = arith.constant 0 : i32
    return %arg0, %c0_i32, %c0_i32_0 : i32, i32, i32
  }
  func.func @transform_1(%arg0: i32) -> (i32, i32, i32) {
    %c0_i32 = arith.constant 0 : i32
    %c0_i32_0 = arith.constant 0 : i32
    %c0_i32_1 = arith.constant 0 : i32
    return %arg0, %c0_i32, %c0_i32_0 : i32, i32, i32
  }
  func.func @transform_2(%arg0: i32) -> (i32, i32) {
    %c0_i32 = arith.constant 0 : i32
    %c0_i32_0 = arith.constant 0 : i32
    %c0_i32_1 = arith.constant 0 : i32
    return %c0_i32, %c0_i32_0 : i32, i32
  }
  func.func @transform_3(%arg0: i32) -> (i32, i32) {
    %c0_i32 = arith.constant 0 : i32
    %c0_i32_0 = arith.constant 0 : i32
    %c0_i32_1 = arith.constant 0 : i32
    return %c0_i32, %c0_i32_0 : i32, i32
  }
  func.func @transform_4(%arg0: i32) -> (i32, i32, i32) {
    %c0_i32 = arith.constant 0 : i32
    %c0_i32_0 = arith.constant 0 : i32
    %c0_i32_1 = arith.constant 0 : i32
    return %arg0, %c0_i32, %c0_i32_0 : i32, i32, i32
  }
}

module attributes {stable_mosaic.version = 11 : i64} {
  func.func @_bn_relu_conv2_kernel(%arg0: i32, %arg1: memref<1x16x128xbf16, #tpu.memory_space<vmem>>, %arg2: memref<1x128xf32, #tpu.memory_space<vmem>>, %arg3: memref<1x128xf32, #tpu.memory_space<vmem>>, %arg4: memref<3x128x128xbf16, #tpu.memory_space<vmem>>, %arg5: memref<1x16x128xbf16, #tpu.memory_space<vmem>>, %arg6: memref<1x2x128xf32, #tpu.memory_space<vmem>>) attributes {dimension_semantics = [#tpu.dimension_semantics<parallel>], iteration_bounds = array<i64: 2>, scalar_prefetch = 0 : i64, scratch_operands = 0 : i64, tpu.core_type = #tpu.core_type<tc>, window_params = [{transform_indices = @transform_0, window_bounds = array<i64: 1, 16, 128>}, {pipeline_mode = #tpu.pipeline_mode<synchronous>, transform_indices = @transform_1, window_bounds = array<i64: 1, 128>}, {pipeline_mode = #tpu.pipeline_mode<synchronous>, transform_indices = @transform_2, window_bounds = array<i64: 1, 128>}, {pipeline_mode = #tpu.pipeline_mode<synchronous>, transform_indices = @transform_3, window_bounds = array<i64: 3, 128, 128>}, {transform_indices = @transform_4, window_bounds = array<i64: 1, 16, 128>}, {transform_indices = @transform_5, window_bounds = array<i64: 1, 2, 128>}]} {
    %c0 = arith.constant 0 : index
    %c0_0 = arith.constant 0 : index
    %c0_1 = arith.constant 0 : index
    %0 = vector.load %arg1[%c0, %c0_0, %c0_1] : memref<1x16x128xbf16, #tpu.memory_space<vmem>>, vector<1x16x128xbf16>
    %1 = vector.shape_cast %0 : vector<1x16x128xbf16> to vector<16x128xbf16>
    %2 = arith.extf %1 : vector<16x128xbf16> to vector<16x128xf32>
    %c0_2 = arith.constant 0 : index
    %c0_3 = arith.constant 0 : index
    %3 = vector.load %arg2[%c0_2, %c0_3] : memref<1x128xf32, #tpu.memory_space<vmem>>, vector<1x128xf32>
    %4 = vector.broadcast %3 : vector<1x128xf32> to vector<16x128xf32>
    %5 = arith.mulf %2, %4 : vector<16x128xf32>
    %c0_4 = arith.constant 0 : index
    %c0_5 = arith.constant 0 : index
    %6 = vector.load %arg3[%c0_4, %c0_5] : memref<1x128xf32, #tpu.memory_space<vmem>>, vector<1x128xf32>
    %7 = vector.broadcast %6 : vector<1x128xf32> to vector<16x128xf32>
    %8 = arith.addf %5, %7 : vector<16x128xf32>
    %cst = arith.constant 0.000000e+00 : f32
    %9 = vector.broadcast %cst : f32 to vector<16x128xf32>
    %10 = arith.maximumf %8, %9 : vector<16x128xf32>
    %11 = arith.truncf %10 : vector<16x128xf32> to vector<16x128xbf16>
    %c1 = arith.constant 1 : index
    %c0_6 = arith.constant 0 : index
    %c0_7 = arith.constant 0 : index
    %12 = vector.load %arg4[%c1, %c0_6, %c0_7] : memref<3x128x128xbf16, #tpu.memory_space<vmem>>, vector<1x128x128xbf16>
    %13 = vector.shape_cast %12 : vector<1x128x128xbf16> to vector<128x128xbf16>
    %cst_8 = arith.constant dense<0.000000e+00> : vector<16x128xf32>
    %14 = tpu.matmul %11, %13, %cst_8 {dimension_numbers = #tpu.dot_dimension_numbers<[1], [0], [0], [1], [0, 0, 1, 1], [], []>} : vector<16x128xbf16>, vector<128x128xbf16>, vector<16x128xf32> -> vector<16x128xf32>
    %cst_9 = arith.constant 0.000000e+00 : bf16
    %15 = vector.broadcast %cst_9 : bf16 to vector<1x128xbf16>
    %16 = vector.extract_strided_slice %11 {offsets = [0, 0], sizes = [15, 128], strides = [1, 1]} : vector<16x128xbf16> to vector<15x128xbf16>
    %17 = tpu.concatenate %15, %16 in 0 : vector<1x128xbf16>, vector<15x128xbf16> -> vector<16x128xbf16>
    %c0_10 = arith.constant 0 : index
    %c0_11 = arith.constant 0 : index
    %c0_12 = arith.constant 0 : index
    %18 = vector.load %arg4[%c0_10, %c0_11, %c0_12] : memref<3x128x128xbf16, #tpu.memory_space<vmem>>, vector<1x128x128xbf16>
    %19 = vector.shape_cast %18 : vector<1x128x128xbf16> to vector<128x128xbf16>
    %cst_13 = arith.constant dense<0.000000e+00> : vector<16x128xf32>
    %20 = tpu.matmul %17, %19, %cst_13 {dimension_numbers = #tpu.dot_dimension_numbers<[1], [0], [0], [1], [0, 0, 1, 1], [], []>} : vector<16x128xbf16>, vector<128x128xbf16>, vector<16x128xf32> -> vector<16x128xf32>
    %21 = arith.addf %14, %20 : vector<16x128xf32>
    %cst_14 = arith.constant 0.000000e+00 : bf16
    %22 = vector.broadcast %cst_14 : bf16 to vector<1x128xbf16>
    %23 = vector.extract_strided_slice %11 {offsets = [1, 0], sizes = [15, 128], strides = [1, 1]} : vector<16x128xbf16> to vector<15x128xbf16>
    %24 = tpu.concatenate %23, %22 in 0 : vector<15x128xbf16>, vector<1x128xbf16> -> vector<16x128xbf16>
    %c2 = arith.constant 2 : index
    %c0_15 = arith.constant 0 : index
    %c0_16 = arith.constant 0 : index
    %25 = vector.load %arg4[%c2, %c0_15, %c0_16] : memref<3x128x128xbf16, #tpu.memory_space<vmem>>, vector<1x128x128xbf16>
    %26 = vector.shape_cast %25 : vector<1x128x128xbf16> to vector<128x128xbf16>
    %cst_17 = arith.constant dense<0.000000e+00> : vector<16x128xf32>
    %27 = tpu.matmul %24, %26, %cst_17 {dimension_numbers = #tpu.dot_dimension_numbers<[1], [0], [0], [1], [0, 0, 1, 1], [], []>} : vector<16x128xbf16>, vector<128x128xbf16>, vector<16x128xf32> -> vector<16x128xf32>
    %28 = arith.addf %21, %27 : vector<16x128xf32>
    %29 = arith.truncf %28 : vector<16x128xf32> to vector<16x128xbf16>
    %c0_18 = arith.constant 0 : index
    %c0_19 = arith.constant 0 : index
    %c0_20 = arith.constant 0 : index
    %30 = vector.load %arg5[%c0_18, %c0_19, %c0_20] : memref<1x16x128xbf16, #tpu.memory_space<vmem>>, vector<1x16x128xbf16>
    %31 = vector.shape_cast %30 : vector<1x16x128xbf16> to vector<16x128xbf16>
    %32 = vector.shape_cast %29 : vector<16x128xbf16> to vector<1x16x128xbf16>
    tpu.vector_store %arg5[%c0_18, %c0_19, %c0_20], %32 {strides = array<i32>} : memref<1x16x128xbf16, #tpu.memory_space<vmem>>, vector<1x16x128xbf16>,
    %33 = arith.extf %29 : vector<16x128xbf16> to vector<16x128xf32>
    %cst_21 = arith.constant dense<0.000000e+00> : vector<128xf32>
    %34 = vector.multi_reduction <add>, %33, %cst_21 [0] : vector<16x128xf32> to vector<128xf32>
    %35 = vector.shape_cast %34 : vector<128xf32> to vector<1x128xf32>
    %36 = arith.mulf %33, %33 : vector<16x128xf32>
    %cst_22 = arith.constant dense<0.000000e+00> : vector<128xf32>
    %37 = vector.multi_reduction <add>, %36, %cst_22 [0] : vector<16x128xf32> to vector<128xf32>
    %38 = vector.shape_cast %37 : vector<128xf32> to vector<1x128xf32>
    %39 = tpu.concatenate %35, %38 in 0 : vector<1x128xf32>, vector<1x128xf32> -> vector<2x128xf32>
    %c0_23 = arith.constant 0 : index
    %c0_24 = arith.constant 0 : index
    %c0_25 = arith.constant 0 : index
    %40 = vector.load %arg6[%c0_23, %c0_24, %c0_25] : memref<1x2x128xf32, #tpu.memory_space<vmem>>, vector<1x2x128xf32>
    %41 = vector.shape_cast %40 : vector<1x2x128xf32> to vector<2x128xf32>
    %42 = vector.shape_cast %39 : vector<2x128xf32> to vector<1x2x128xf32>
    tpu.vector_store %arg6[%c0_23, %c0_24, %c0_25], %42 {strides = array<i32>} : memref<1x2x128xf32, #tpu.memory_space<vmem>>, vector<1x2x128xf32>,
    return
  }
  func.func @transform_0(%arg0: i32) -> (i32, i32, i32) {
    %c0_i32 = arith.constant 0 : i32
    %c0_i32_0 = arith.constant 0 : i32
    %c0_i32_1 = arith.constant 0 : i32
    return %arg0, %c0_i32, %c0_i32_0 : i32, i32, i32
  }
  func.func @transform_1(%arg0: i32) -> (i32, i32) {
    %c0_i32 = arith.constant 0 : i32
    %c0_i32_0 = arith.constant 0 : i32
    %c0_i32_1 = arith.constant 0 : i32
    return %c0_i32, %c0_i32_0 : i32, i32
  }
  func.func @transform_2(%arg0: i32) -> (i32, i32) {
    %c0_i32 = arith.constant 0 : i32
    %c0_i32_0 = arith.constant 0 : i32
    %c0_i32_1 = arith.constant 0 : i32
    return %c0_i32, %c0_i32_0 : i32, i32
  }
  func.func @transform_3(%arg0: i32) -> (i32, i32, i32) {
    %c0_i32 = arith.constant 0 : i32
    %c0_i32_0 = arith.constant 0 : i32
    %c0_i32_1 = arith.constant 0 : i32
    %c0_i32_2 = arith.constant 0 : i32
    return %c0_i32, %c0_i32_0, %c0_i32_1 : i32, i32, i32
  }
  func.func @transform_4(%arg0: i32) -> (i32, i32, i32) {
    %c0_i32 = arith.constant 0 : i32
    %c0_i32_0 = arith.constant 0 : i32
    %c0_i32_1 = arith.constant 0 : i32
    return %arg0, %c0_i32, %c0_i32_0 : i32, i32, i32
  }
  func.func @transform_5(%arg0: i32) -> (i32, i32, i32) {
    %c0_i32 = arith.constant 0 : i32
    %c0_i32_0 = arith.constant 0 : i32
    %c0_i32_1 = arith.constant 0 : i32
    return %arg0, %c0_i32, %c0_i32_0 : i32, i32, i32
  }
}

</mosaic_0001>

<llo_original>
// kernel: tile.23
$region0: #{tile.23}
  #allocation0 [shape = 's32[1]{0}', space=sflag, size = 0x4, scoped, tag = 'scoped memory for tile.23']
  %s0 = inlined_call_operand.vmem [shape: f32[8], index: 0, kind: input, shape index: {}]
  %s1 = inlined_call_operand.vmem [shape: f32[16,8], index: 1, kind: output, shape index: {}]
  // Predicated region
  $region2: #{tile.23} parent=0 // pred_check
    _
  $region3: #{tile.23} parent=0 // pred_check_branch
    %3 = sbr.rel (0) target = $region5
  $region4: #{tile.23} parent=0 // pred_region
    _
  $region5: #{tile.23} parent=0 // pred_fallthru
    _
  %v4 = vld [vmem:[%s0] ss:$0 sm:$0xff]
  %5 = vst [vmem:[%s1] sm:$0xff] %v4
  %s6 = scalar_lea.vmem %s1, 8
  %7 = vst [vmem:[%s6] sm:$0xff] %v4

// kernel: tile.24
$region0: #{tile.24}
  %s0 = inlined_call_operand.vmem [shape: f32[16,8], index: 0, kind: input, shape index: {}]
  %s1 = inlined_call_operand.vmem [shape: f32[1,128], index: 1, kind: output, shape index: {}]
  $region1: #{tile.24} parent=0
    #allocation0 [shape = 'u8[4096]{0}', space=vmem, size = 0x1000, scoped, tag = 'scoped mem for output reshape']
    %v2 = vld [vmem:[%s0] sm:$0x1]
    %vm3 = vcmask 64512
    %4 = vst.msk [vmem:[#allocation0] sm:$0x1] %vm3, %v2
    %s5 = scalar_lea.vmem %s0, 15
    %v6 = vld [vmem:[%s5] sm:$0x1]
    %7 = vrot.lane.b32.xlu0 %v6, 120
    %v8 = vpop.permute.xlu0 %7
    %vm9 = vcmask 1048512
    %10 = vst.msk [vmem:[#allocation0] sm:$0x1] %vm9, %v8
    %s11 = scalar_lea.vmem %s0, 14
    %v12 = vld [vmem:[%s11] sm:$0x1]
    %13 = vrot.lane.b32.xlu0 %v12, 112
    %v14 = vpop.permute.xlu0 %13
    %vm15 = vcmask 982912
    %16 = vst.msk [vmem:[#allocation0] sm:$0x1] %vm15, %v14
    %s17 = scalar_lea.vmem %s0, 13
    %v18 = vld [vmem:[%s17] sm:$0x1]
    %19 = vrot.lane.b32.xlu0 %v18, 104
    %v20 = vpop.permute.xlu0 %19
    %vm21 = vcmask 917312
    %22 = vst.msk [vmem:[#allocation0] sm:$0x1] %vm21, %v20
    %s23 = scalar_lea.vmem %s0, 12
    %v24 = vld [vmem:[%s23] sm:$0x1]
    %25 = vrot.lane.b32.xlu0 %v24, 96
    %v26 = vpop.permute.xlu0 %25
    %vm27 = vcmask 851712
    %28 = vst.msk [vmem:[#allocation0] sm:$0x1] %vm27, %v26
    %s29 = scalar_lea.vmem %s0, 11
    %v30 = vld [vmem:[%s29] sm:$0x1]
    %31 = vrot.lane.b32.xlu0 %v30, 88
    %v32 = vpop.permute.xlu0 %31
    %vm33 = vcmask 786112
    %34 = vst.msk [vmem:[#allocation0] sm:$0x1] %vm33, %v32
    %s35 = scalar_lea.vmem %s0, 10
    %v36 = vld [vmem:[%s35] sm:$0x1]
    %37 = vrot.lane.b32.xlu0 %v36, 80
    %v38 = vpop.permute.xlu0 %37
    %vm39 = vcmask 720512
    %40 = vst.msk [vmem:[#allocation0] sm:$0x1] %vm39, %v38
    %s41 = scalar_lea.vmem %s0, 9
    %v42 = vld [vmem:[%s41] sm:$0x1]
    %43 = vrot.lane.b32.xlu0 %v42, 72
    %v44 = vpop.permute.xlu0 %43
    %vm45 = vcmask 654912
    %46 = vst.msk [vmem:[#allocation0] sm:$0x1] %vm45, %v44
    %s47 = scalar_lea.vmem %s0, 8
    %v48 = vld [vmem:[%s47] sm:$0x1]
    %49 = vrot.lane.b32.xlu0 %v48, 64
    %v50 = vpop.permute.xlu0 %49
    %vm51 = vcmask 589312
    %52 = vst.msk [vmem:[#allocation0] sm:$0x1] %vm51, %v50
    %s53 = scalar_lea.vmem %s0, 7
    %v54 = vld [vmem:[%s53] sm:$0x1]
    %55 = vrot.lane.b32.xlu0 %v54, 56
    %v56 = vpop.permute.xlu0 %55
    %vm57 = vcmask 523712
    %58 = vst.msk [vmem:[#allocation0] sm:$0x1] %vm57, %v56
    %s59 = scalar_lea.vmem %s0, 6
    %v60 = vld [vmem:[%s59] sm:$0x1]
    %61 = vrot.lane.b32.xlu0 %v60, 48
    %v62 = vpop.permute.xlu0 %61
    %vm63 = vcmask 458112
    %64 = vst.msk [vmem:[#allocation0] sm:$0x1] %vm63, %v62
    %s65 = scalar_lea.vmem %s0, 5
    %v66 = vld [vmem:[%s65] sm:$0x1]
    %67 = vrot.lane.b32.xlu0 %v66, 40
    %v68 = vpop.permute.xlu0 %67
    %vm69 = vcmask 392512
    %70 = vst.msk [vmem:[#allocation0] sm:$0x1] %vm69, %v68
    %s71 = scalar_lea.vmem %s0, 4
    %v72 = vld [vmem:[%s71] sm:$0x1]
    %73 = vrot.lane.b32.xlu0 %v72, 32
    %v74 = vpop.permute.xlu0 %73
    %vm75 = vcmask 326912
    %76 = vst.msk [vmem:[#allocation0] sm:$0x1] %vm75, %v74
    %s77 = scalar_lea.vmem %s0, 3
    %v78 = vld [vmem:[%s77] sm:$0x1]
    %79 = vrot.lane.b32.xlu0 %v78, 24
    %v80 = vpop.permute.xlu0 %79
    %vm81 = vcmask 261312
    %82 = vst.msk [vmem:[#allocation0] sm:$0x1] %vm81, %v80
    %s83 = scalar_lea.vmem %s0, 2
    %v84 = vld [vmem:[%s83] sm:$0x1]
    %85 = vrot.lane.b32.xlu0 %v84, 16
    %v86 = vpop.permute.xlu0 %85
    %vm87 = vcmask 195712
    %88 = vst.msk [vmem:[#allocation0] sm:$0x1] %vm87, %v86
    %s89 = scalar_lea.vmem %s0, 1
    %v90 = vld [vmem:[%s89] sm:$0x1]
    %91 = vrot.lane.b32.xlu0 %v90, 8
    %v92 = vpop.permute.xlu0 %91
    %vm93 = vcmask 130112
    %94 = vst.msk [vmem:[#allocation0] sm:$0x1] %vm93, %v92
    %s96 = ssub.s32 2, 1
    %v97 = vld [vmem:[#allocation0] sm:%s96]
    %s99 = ssub.s32 2, 1
    %100 = vst [vmem:[%s1] sm:%s99] %v97

// kernel: basic_block_forward.3
$region0: #{basic_block_forward.3}
  #allocation0 [shape = 'u32[]', space=smem, size = 0x4, offset = 0x4, fixed_abs, tag = 'smem constant byte address 0x4 - core index']
  #allocation1 [shape = 'u32[72,128]{1,0:T(1,128)}', space=vmem, size = 0x9000, scoped, tag = 'internal scratch']
  %s0 = inlined_call_operand.vmem [shape: f32[2,16,128], index: 0, kind: input, shape index: {}]
  %s1 = inlined_call_operand.vmem [shape: bf16[3,128,128], index: 1, kind: input, shape index: {}]
  %s2 = inlined_call_operand.vmem [shape: bf16[2,16,128], index: 2, kind: output, shape index: {0}]
  %s3 = inlined_call_operand.vmem [shape: f32[2,2,128], index: 3, kind: output, shape index: {1}]
  %4 = xla_tuple %s2, %s3
  %s5 = sld [smem:[#allocation0]]
  $region49: #{basic_block_forward.3} parent=0
    _
  %s7 = ssub.s32 1, %s5
  %s8 = scalar_select 0, %s7, %s5
  loop: start=0, step=1, limit=4
  $region2: #{basic_block_forward.3} parent=0 // loop_pre_header
    _
  $region3: #{basic_block_forward.3} parent=0 // loop_header
    %s10 = sphi 0, %s14
    %p11 = scmp.ge.s32.totalorder %s10, 4
    %s20 = sphi 0, %s22
    %s23 = sphi 0, %s20
    %s24 = sphi 0, %s23
    %s40 = sphi 0, %s24
    %s44 = sphi 0, %s44
    %s46 = sphi 0, %s44
    %s47 = sphi 0, %s46
    %s61 = sphi 0, %s47
    %s67 = sphi 0, %s69
    %s70 = sphi 0, %s67
    %s71 = sphi 0, %s70
    %s87 = sphi 0, %s71
    %s93 = sphi 0, %s95
    %s96 = sphi 0, %s93
    %s97 = sphi 0, %s96
    %s113 = sphi 0, %s97
  $region4: #{basic_block_forward.3} parent=0 // loop_header_branch
    %13 = sbr.rel (%p11) target = $region8
  $region5: #{basic_block_forward.3} parent=0 // loop_body
    %s15 = ssub.s32 %s10, 1
    %s16 = ssub.s32 %s10, 2
    %s17 = sadd.s32 %s10, 1
    %s18 = ssub.s32 %s10, %s17
    %p19 = scmp.eq.s32.totalorder %s18, 0
    %s21 = sadd.s32 %s20, 1
    %s22 = scalar_select %p19, %s20, %s21
    %p25 = pneg %p19
    %p26 = scmp.eq.s32.totalorder %s10, 1
    %p27 = por %p25, %p26
    %p28 = scmp.ne.s32.totalorder %s20, %s23
    %p29 = scmp.eq.s32.totalorder %s10, 0
    %p30 = por %p28, %p29
    %p31 = scmp.ne.s32.totalorder %s20, %s23
    %p32 = scmp.eq.s32.totalorder %s15, 1
    %p33 = por %p31, %p32
    %p34 = scmp.ne.s32.totalorder %s23, %s24
    %p35 = scmp.eq.s32.totalorder %s15, 0
    %p36 = por %p34, %p35
    %p37 = scmp.ne.s32.totalorder %s23, %s24
    %p38 = scmp.eq.s32.totalorder %s16, 1
    %p39 = por %p37, %p38
    %p41 = scmp.ne.s32.totalorder %s24, %s40
    %p42 = scmp.eq.s32.totalorder %s16, 0
    %p43 = por %p41, %p42
    %s45 = sadd.s32 %s44, 1
    %p48 = scmp.eq.s32.totalorder %s10, 1
    %p49 = scmp.ne.s32.totalorder %s44, %s46
    %p50 = scmp.eq.s32.totalorder %s10, 0
    %p51 = por %p49, %p50
    %p52 = scmp.ne.s32.totalorder %s44, %s46
    %p53 = scmp.eq.s32.totalorder %s15, 1
    %p54 = por %p52, %p53
    %p55 = scmp.ne.s32.totalorder %s46, %s47
    %p56 = scmp.eq.s32.totalorder %s15, 0
    %p57 = por %p55, %p56
    %p58 = scmp.ne.s32.totalorder %s46, %s47
    %p59 = scmp.eq.s32.totalorder %s16, 1
    %p60 = por %p58, %p59
    %p62 = scmp.ne.s32.totalorder %s47, %s61
    %p63 = scmp.eq.s32.totalorder %s16, 0
    %p64 = por %p62, %p63
    %s65 = ssub.s32 %s10, %s17
    %p66 = scmp.eq.s32.totalorder %s65, 0
    %s68 = sadd.s32 %s67, 1
    %s69 = scalar_select %p66, %s67, %s68
    %p72 = pneg %p66
    %p73 = scmp.eq.s32.totalorder %s10, 1
    %p74 = por %p72, %p73
    %p75 = scmp.ne.s32.totalorder %s67, %s70
    %p76 = scmp.eq.s32.totalorder %s10, 0
    %p77 = por %p75, %p76
    %p78 = scmp.ne.s32.totalorder %s67, %s70
    %p79 = scmp.eq.s32.totalorder %s15, 1
    %p80 = por %p78, %p79
    %p81 = scmp.ne.s32.totalorder %s70, %s71
    %p82 = scmp.eq.s32.totalorder %s15, 0
    %p83 = por %p81, %p82
    %p84 = scmp.ne.s32.totalorder %s70, %s71
    %p85 = scmp.eq.s32.totalorder %s16, 1
    %p86 = por %p84, %p85
    %p88 = scmp.ne.s32.totalorder %s71, %s87
    %p89 = scmp.eq.s32.totalorder %s16, 0
    %p90 = por %p88, %p89
    %s91 = ssub.s32 %s10, %s17
    %p92 = scmp.eq.s32.totalorder %s91, 0
    %s94 = sadd.s32 %s93, 1
    %s95 = scalar_select %p92, %s93, %s94
    %p98 = pneg %p92
    %p99 = scmp.eq.s32.totalorder %s10, 1
    %p100 = por %p98, %p99
    %p101 = scmp.ne.s32.totalorder %s93, %s96
    %p102 = scmp.eq.s32.totalorder %s10, 0
    %p103 = por %p101, %p102
    %p104 = scmp.ne.s32.totalorder %s93, %s96
    %p105 = scmp.eq.s32.totalorder %s15, 1
    %p106 = por %p104, %p105
    %p107 = scmp.ne.s32.totalorder %s96, %s97
    %p108 = scmp.eq.s32.totalorder %s15, 0
    %p109 = por %p107, %p108
    %p110 = scmp.ne.s32.totalorder %s96, %s97
    %p111 = scmp.eq.s32.totalorder %s16, 1
    %p112 = por %p110, %p111
    %p114 = scmp.ne.s32.totalorder %s97, %s113
    %p115 = scmp.eq.s32.totalorder %s16, 0
    %p116 = por %p114, %p115
    %p117 = scmp.le.s32.totalorder 1, %s10
    %p118 = scmp.lt.s32.totalorder %s10, 3
    %p119 = pnand %p117, %p118
    %p120 = pneg %p119
    // Predicated region
    $region9: #{basic_block_forward.3} parent=5 // pred_check
      _
    $region10: #{basic_block_forward.3} parent=5 // pred_check_branch
      %122 = sbr.rel (%p119) target = $region12
    $region11: #{basic_block_forward.3} parent=5 // pred_region
      %s123 = ssub.s32 %s10, 1
      // Predicated region
      $region13: #{basic_block_forward.3} parent=11 // pred_check
        %p124 = pneg %p57
      $region14: #{basic_block_forward.3} parent=11 // pred_check_branch
        %126 = sbr.rel (%p124) target = $region16
      $region15: #{basic_block_forward.3} parent=11 // pred_region
        _
      $region16: #{basic_block_forward.3} parent=11 // pred_fallthru
        _
    $region12: #{basic_block_forward.3} parent=5 // pred_fallthru
      _
    %p127 = scmp.lt.s32.totalorder %s10, 2
    // Predicated region
    $region17: #{basic_block_forward.3} parent=5 // pred_check
      %p128 = pneg %p127
    $region18: #{basic_block_forward.3} parent=5 // pred_check_branch
      %130 = sbr.rel (%p128) target = $region20
    $region19: #{basic_block_forward.3} parent=5 // pred_region
      // Predicated region
      $region21: #{basic_block_forward.3} parent=19 // pred_check
        %p131 = pneg %p30
      $region22: #{basic_block_forward.3} parent=19 // pred_check_branch
        %133 = sbr.rel (%p131) target = $region24
      $region23: #{basic_block_forward.3} parent=19 // pred_region
        %p134 = scmp.lt.s32.totalorder %s10, 1
        %s135 = scalar_select %p134, %s10, 1
        %s136 = smul.addr %s135, 2
        %s137 = smul.addr %s136, 8
        %s138 = scalar_lea.vmem %s0, %s137
      $region24: #{basic_block_forward.3} parent=19 // pred_fallthru
        _
    $region20: #{basic_block_forward.3} parent=5 // pred_fallthru
      _
    %p139 = scmp.le.s32.totalorder 1, %s10
    %p140 = scmp.lt.s32.totalorder %s10, 3
    %p141 = pnand %p139, %p140
    %p142 = pneg %p141
    // Predicated region
    $region25: #{basic_block_forward.3} parent=5 // pred_check
      _
    $region26: #{basic_block_forward.3} parent=5 // pred_check_branch
      %144 = sbr.rel (%p141) target = $region28
    $region27: #{basic_block_forward.3} parent=5 // pred_region
      %s145 = ssub.s32 %s10, 1
      %p146 = scmp.lt.s32.totalorder %s15, 1
      %s147 = scalar_select %p146, %s15, 1
      %s148 = smul.addr %s147, 2
      %s149 = smul.addr %s148, 8
      %s150 = scalar_lea.vmem %s0, %s149
      %p151 = pneg %p36
      %p152 = pneg %p33
      %p153 = pneg %p57
      %p154 = pneg %p54
      %p155 = pneg %p83
      %p156 = pneg %p80
      %p157 = scmp.lt.s32.totalorder %s15, 1
      %s158 = scalar_select %p157, %s15, 1
      %s159 = smul.addr %s158, 2
      %s160 = smul.addr %s159, 4
      %s161 = scalar_lea.vmem %s2, %s160
      %p162 = pneg %p109
      %p163 = pneg %p106
      %p164 = scmp.lt.s32.totalorder %s15, 1
      %s165 = scalar_select %p164, %s15, 1
      %s166 = smul.addr %s165, 2
      %s167 = scalar_lea.vmem %s3, %s166
      %p168 = scmp.lt.s32.totalorder %s15, 1
      %s169 = scalar_select %p168, %s15, 1
      %s170 = smul.addr %s169, 2
      %s171 = smul.addr %s170, 8
      %s172 = scalar_lea.vmem %s0, %s171
      %p173 = scmp.lt.s32.totalorder %s15, 1
      %s174 = scalar_select %p173, %s15, 1
      %s175 = smul.addr %s174, 2
      %s176 = smul.addr %s175, 4
      %s177 = scalar_lea.vmem %s2, %s176
      %p178 = scmp.lt.s32.totalorder %s15, 1
      %s179 = scalar_select %p178, %s15, 1
      %s180 = smul.addr %s179, 2
      %s181 = scalar_lea.vmem %s3, %s180
      %v183 = vld [vmem:[%s172] sm:$0xff]
      %v184 = vld [vmem:[%s172 + $0x8] sm:$0xff]
      %v185 = vpack.c.bf16 %v183, %v183
      %v186 = vpack.c.bf16 %v184, %v184
      %s187 = scalar_lea.vmem %s1, 64
      %v188 = vld [vmem:[%s187] sm:$0xf]
      %v189 = vld [vmem:[%s187 + $0x4] sm:$0xf]
      %v190 = vld [vmem:[%s187 + $0x8] sm:$0xf]
      %v191 = vld [vmem:[%s187 + $0xc] sm:$0xf]
      %v192 = vld [vmem:[%s187 + $0x10] sm:$0xf]
      %v193 = vld [vmem:[%s187 + $0x14] sm:$0xf]
      %v194 = vld [vmem:[%s187 + $0x18] sm:$0xf]
      %v195 = vld [vmem:[%s187 + $0x1c] sm:$0xf]
      %v196 = vld [vmem:[%s187 + $0x20] sm:$0xf]
      %v197 = vld [vmem:[%s187 + $0x24] sm:$0xf]
      %v198 = vld [vmem:[%s187 + $0x28] sm:$0xf]
      %v199 = vld [vmem:[%s187 + $0x2c] sm:$0xf]
      %v200 = vld [vmem:[%s187 + $0x30] sm:$0xf]
      %v201 = vld [vmem:[%s187 + $0x34] sm:$0xf]
      %v202 = vld [vmem:[%s187 + $0x38] sm:$0xf]
      %v203 = vld [vmem:[%s187 + $0x3c] sm:$0xf]
      %v206 = vunpack.c.l.b16 %v185
      %v207 = vunpack.c.l.b16 %v186
      %v208 = vpack.c.b16 %v207, %v206
      %v210 = vshrl.u32 %v208, 16
      %v212 = vrot.slane %v210, 7
      %v213 = vshll.u32 %v208, 16
      %v215 = vor.u32 %v212, %v213
      %vm217 = vcmask 1040384
      %vm218 = vsmask.f32 256
      %vm219 = vmand %vm217, %vm218
      %v220 = vsel %vm219, 0, %v215
      %v221 = vld [vmem:[%s1] sm:$0xf]
      %v222 = vld [vmem:[%s1 + $0x4] sm:$0xf]
      %v223 = vld [vmem:[%s1 + $0x8] sm:$0xf]
      %v224 = vld [vmem:[%s1 + $0xc] sm:$0xf]
      %v225 = vld [vmem:[%s1 + $0x10] sm:$0xf]
      %v226 = vld [vmem:[%s1 + $0x14] sm:$0xf]
      %v227 = vld [vmem:[%s1 + $0x18] sm:$0xf]
      %v228 = vld [vmem:[%s1 + $0x1c] sm:$0xf]
      %v229 = vld [vmem:[%s1 + $0x20] sm:$0xf]
      %v230 = vld [vmem:[%s1 + $0x24] sm:$0xf]
      %v231 = vld [vmem:[%s1 + $0x28] sm:$0xf]
      %v232 = vld [vmem:[%s1 + $0x2c] sm:$0xf]
      %v233 = vld [vmem:[%s1 + $0x30] sm:$0xf]
      %v234 = vld [vmem:[%s1 + $0x34] sm:$0xf]
      %v235 = vld [vmem:[%s1 + $0x38] sm:$0xf]
      %v236 = vld [vmem:[%s1 + $0x3c] sm:$0xf]
      %v253 = vunpack.c.l.b16 %v221
      %v254 = vunpack.c.l.b16 %v222
      %v255 = vunpack.c.l.b16 %v223
      %v256 = vunpack.c.l.b16 %v224
      %v257 = vunpack.c.l.b16 %v225
      %v258 = vunpack.c.l.b16 %v226
      %v259 = vunpack.c.l.b16 %v227
      %v260 = vunpack.c.l.b16 %v228
      %v261 = vunpack.c.l.b16 %v229
      %v262 = vunpack.c.l.b16 %v230
      %v263 = vunpack.c.l.b16 %v231
      %v264 = vunpack.c.l.b16 %v232
      %v265 = vunpack.c.l.b16 %v233
      %v266 = vunpack.c.l.b16 %v234
      %v267 = vunpack.c.l.b16 %v235
      %v268 = vunpack.c.l.b16 %v236
      %v269 = vpack.c.b16 %v254, %v253
      %v270 = vpack.c.b16 %v256, %v255
      %v271 = vpack.c.b16 %v258, %v257
      %v272 = vpack.c.b16 %v260, %v259
      %v273 = vpack.c.b16 %v262, %v261
      %v274 = vpack.c.b16 %v264, %v263
      %v275 = vpack.c.b16 %v266, %v265
      %v276 = vpack.c.b16 %v268, %v267
      %285 = vmatpush.bf16.msra.mxu0 %v276
      %286 = vmatpush.bf16.msra.mxu0 %v275
      %287 = vmatpush.bf16.msra.mxu0 %v274
      %288 = vmatpush.bf16.msra.mxu0 %v273
      %289 = vmatpush.bf16.msra.mxu0 %v272
      %290 = vmatpush.bf16.msra.mxu0 %v271
      %291 = vmatpush.bf16.msra.mxu0 %v270
      %292 = vmatpush.bf16.msra.mxu0 %v269
      %293 = vmatmul.bf16.gmra.mxu0 %v220
      %v294 = vpop.f32.mrf.mxu0
      %v295 = vadd.f32 0.0, %v294
      %v296 = vpop.f32.mrf.mxu0
      %v297 = vadd.f32 0.0, %v296
      %298 = vdwg.mxu0
      %v316 = vunpack.c.l.b16 %v188
      %v317 = vunpack.c.l.b16 %v189
      %v318 = vunpack.c.l.b16 %v190
      %v319 = vunpack.c.l.b16 %v191
      %v320 = vunpack.c.l.b16 %v192
      %v321 = vunpack.c.l.b16 %v193
      %v322 = vunpack.c.l.b16 %v194
      %v323 = vunpack.c.l.b16 %v195
      %v324 = vunpack.c.l.b16 %v196
      %v325 = vunpack.c.l.b16 %v197
      %v326 = vunpack.c.l.b16 %v198
      %v327 = vunpack.c.l.b16 %v199
      %v328 = vunpack.c.l.b16 %v200
      %v329 = vunpack.c.l.b16 %v201
      %v330 = vunpack.c.l.b16 %v202
      %v331 = vunpack.c.l.b16 %v203
      %v332 = vpack.c.b16 %v317, %v316
      %v333 = vpack.c.b16 %v319, %v318
      %v334 = vpack.c.b16 %v321, %v320
      %v335 = vpack.c.b16 %v323, %v322
      %v336 = vpack.c.b16 %v325, %v324
      %v337 = vpack.c.b16 %v327, %v326
      %v338 = vpack.c.b16 %v329, %v328
      %v339 = vpack.c.b16 %v331, %v330
      %348 = vmatpush.bf16.msra.mxu0 %v339
      %349 = vmatpush.bf16.msra.mxu0 %v338
      %350 = vmatpush.bf16.msra.mxu0 %v337
      %351 = vmatpush.bf16.msra.mxu0 %v336
      %352 = vmatpush.bf16.msra.mxu0 %v335
      %353 = vmatpush.bf16.msra.mxu0 %v334
      %354 = vmatpush.bf16.msra.mxu0 %v333
      %355 = vmatpush.bf16.msra.mxu0 %v332
      %356 = vmatmul.bf16.gmra.mxu0 %v208
      %v357 = vpop.f32.mrf.mxu0
      %v358 = vadd.f32 %v295, %v357
      %v359 = vpop.f32.mrf.mxu0
      %v360 = vadd.f32 %v297, %v359
      %361 = vdwg.mxu0
      %v362 = vrot.slane %v213, 1
      %v363 = vor.u32 %v210, %v362
      %vm365 = vcmask 1047552
      %vm366 = vsmask.f32 7424
      %vm367 = vmand %vm365, %vm366
      %v368 = vsel %vm367, %v363, 0
      %s369 = scalar_lea.vmem %s1, 128
      %v370 = vld [vmem:[%s369] sm:$0xf]
      %v371 = vld [vmem:[%s369 + $0x4] sm:$0xf]
      %v372 = vld [vmem:[%s369 + $0x8] sm:$0xf]
      %v373 = vld [vmem:[%s369 + $0xc] sm:$0xf]
      %v374 = vld [vmem:[%s369 + $0x10] sm:$0xf]
      %v375 = vld [vmem:[%s369 + $0x14] sm:$0xf]
      %v376 = vld [vmem:[%s369 + $0x18] sm:$0xf]
      %v377 = vld [vmem:[%s369 + $0x1c] sm:$0xf]
      %v378 = vld [vmem:[%s369 + $0x20] sm:$0xf]
      %v379 = vld [vmem:[%s369 + $0x24] sm:$0xf]
      %v380 = vld [vmem:[%s369 + $0x28] sm:$0xf]
      %v381 = vld [vmem:[%s369 + $0x2c] sm:$0xf]
      %v382 = vld [vmem:[%s369 + $0x30] sm:$0xf]
      %v383 = vld [vmem:[%s369 + $0x34] sm:$0xf]
      %v384 = vld [vmem:[%s369 + $0x38] sm:$0xf]
      %v385 = vld [vmem:[%s369 + $0x3c] sm:$0xf]
      %v402 = vunpack.c.l.b16 %v370
      %v403 = vunpack.c.l.b16 %v371
      %v404 = vunpack.c.l.b16 %v372
      %v405 = vunpack.c.l.b16 %v373
      %v406 = vunpack.c.l.b16 %v374
      %v407 = vunpack.c.l.b16 %v375
      %v408 = vunpack.c.l.b16 %v376
      %v409 = vunpack.c.l.b16 %v377
      %v410 = vunpack.c.l.b16 %v378
      %v411 = vunpack.c.l.b16 %v379
      %v412 = vunpack.c.l.b16 %v380
      %v413 = vunpack.c.l.b16 %v381
      %v414 = vunpack.c.l.b16 %v382
      %v415 = vunpack.c.l.b16 %v383
      %v416 = vunpack.c.l.b16 %v384
      %v417 = vunpack.c.l.b16 %v385
      %v418 = vpack.c.b16 %v403, %v402
      %v419 = vpack.c.b16 %v405, %v404
      %v420 = vpack.c.b16 %v407, %v406
      %v421 = vpack.c.b16 %v409, %v408
      %v422 = vpack.c.b16 %v411, %v410
      %v423 = vpack.c.b16 %v413, %v412
      %v424 = vpack.c.b16 %v415, %v414
      %v425 = vpack.c.b16 %v417, %v416
      %434 = vmatpush.bf16.msra.mxu0 %v425
      %435 = vmatpush.bf16.msra.mxu0 %v424
      %436 = vmatpush.bf16.msra.mxu0 %v423
      %437 = vmatpush.bf16.msra.mxu0 %v422
      %438 = vmatpush.bf16.msra.mxu0 %v421
      %439 = vmatpush.bf16.msra.mxu0 %v420
      %440 = vmatpush.bf16.msra.mxu0 %v419
      %441 = vmatpush.bf16.msra.mxu0 %v418
      %442 = vmatmul.bf16.gmra.mxu0 %v368
      %v443 = vpop.f32.mrf.mxu0
      %v444 = vadd.f32 0.0, %v443
      %v445 = vpop.f32.mrf.mxu0
      %v446 = vadd.f32 0.0, %v445
      %447 = vdwg.mxu0
      %v448 = vadd.f32 %v358, %v444
      %v449 = vadd.f32 %v360, %v446
      %v450 = vpack.c.bf16 %v448, %v448
      %v451 = vpack.c.bf16 %v449, %v449
      %452 = vst [vmem:[%s177] sm:$0xf] %v450
      %453 = vst [vmem:[%s177 + $0x4] sm:$0xf] %v451
      %v454 = vunpack.c.l.bf16 %v450
      %v455 = vunpack.c.l.bf16 %v451
      %v456 = vadd.f32 %v454, %v455
      %v457 = vrot.slane %v456, 4
      %v458 = vadd.f32 %v456, %v457
      %v459 = vrot.slane %v458, 2
      %v460 = vadd.f32 %v458, %v459
      %v461 = vrot.slane %v460, 1
      %v462 = vadd.f32 %v460, %v461
      %v463 = vmul.f32 %v454, %v454
      %v464 = vmul.f32 %v455, %v455
      %v465 = vadd.f32 %v463, %v464
      %v466 = vrot.slane %v465, 4
      %v467 = vadd.f32 %v465, %v466
      %v468 = vrot.slane %v467, 2
      %v469 = vadd.f32 %v467, %v468
      %v470 = vrot.slane %v469, 1
      %v471 = vadd.f32 %v469, %v470
      %vm472 = vcmask 1040384
      %v473 = vsel %vm472, %v462, %v471
      %474 = vst [vmem:[%s181] sm:$0x3] %v473
      %p475 = scmp.lt.s32.totalorder %s15, 1
      %s476 = scalar_select %p475, %s15, 1
      %s477 = smul.addr %s476, 2
      %s478 = smul.addr %s477, 4
      %s479 = scalar_lea.vmem %s2, %s478
      %p480 = scmp.lt.s32.totalorder %s15, 1
      %s481 = scalar_select %p480, %s15, 1
      %s482 = smul.addr %s481, 2
      %s483 = scalar_lea.vmem %s3, %s482
      // Predicated region
      $region29: #{basic_block_forward.3} parent=27 // pred_check
        %p484 = pneg %p80
      $region30: #{basic_block_forward.3} parent=27 // pred_check_branch
        %486 = sbr.rel (%p484) target = $region32
      $region31: #{basic_block_forward.3} parent=27 // pred_region
        _
      $region32: #{basic_block_forward.3} parent=27 // pred_fallthru
        _
      // Predicated region
      $region33: #{basic_block_forward.3} parent=27 // pred_check
        %p487 = pneg %p106
      $region34: #{basic_block_forward.3} parent=27 // pred_check_branch
        %489 = sbr.rel (%p487) target = $region36
      $region35: #{basic_block_forward.3} parent=27 // pred_region
        _
      $region36: #{basic_block_forward.3} parent=27 // pred_fallthru
        _
    $region28: #{basic_block_forward.3} parent=5 // pred_fallthru
      _
    %p490 = scmp.le.s32.totalorder 2, %s10
    // Predicated region
    $region37: #{basic_block_forward.3} parent=5 // pred_check
      %p491 = pneg %p490
    $region38: #{basic_block_forward.3} parent=5 // pred_check_branch
      %493 = sbr.rel (%p491) target = $region40
    $region39: #{basic_block_forward.3} parent=5 // pred_region
      %s494 = ssub.s32 %s10, 2
      // Predicated region
      $region41: #{basic_block_forward.3} parent=39 // pred_check
        %p495 = pneg %p86
      $region42: #{basic_block_forward.3} parent=39 // pred_check_branch
        %497 = sbr.rel (%p495) target = $region44
      $region43: #{basic_block_forward.3} parent=39 // pred_region
        %p498 = scmp.lt.s32.totalorder %s16, 1
        %s499 = scalar_select %p498, %s16, 1
        %s500 = smul.addr %s499, 2
        %s501 = smul.addr %s500, 4
        %s502 = scalar_lea.vmem %s2, %s501
      $region44: #{basic_block_forward.3} parent=39 // pred_fallthru
        _
      // Predicated region
      $region45: #{basic_block_forward.3} parent=39 // pred_check
        %p503 = pneg %p112
      $region46: #{basic_block_forward.3} parent=39 // pred_check_branch
        %505 = sbr.rel (%p503) target = $region48
      $region47: #{basic_block_forward.3} parent=39 // pred_region
        %p506 = scmp.lt.s32.totalorder %s16, 1
        %s507 = scalar_select %p506, %s16, 1
        %s508 = smul.addr %s507, 2
        %s509 = scalar_lea.vmem %s3, %s508
      $region48: #{basic_block_forward.3} parent=39 // pred_fallthru
        _
    $region40: #{basic_block_forward.3} parent=5 // pred_fallthru
      _
  $region6: #{basic_block_forward.3} parent=0 // loop_footer
    %s14 = sadd.s32 1, %s10
  $region7: #{basic_block_forward.3} parent=0 // loop_footer_branch
    %9 = sbr.rel target = $region3
  $region8: #{basic_block_forward.3} parent=0 // loop_exit
    _

// kernel: basic_block_forward.5
$region0: #{basic_block_forward.5}
  #allocation0 [shape = 'u32[]', space=smem, size = 0x4, offset = 0x4, fixed_abs, tag = 'smem constant byte address 0x4 - core index']
  #allocation1 [shape = 'u32[72,128]{1,0:T(1,128)}', space=vmem, size = 0x9000, scoped, tag = 'internal scratch']
  %s0 = inlined_call_operand.vmem [shape: bf16[2,16,128], index: 0, kind: input, shape index: {}]
  %s1 = inlined_call_operand.vmem [shape: f32[2,16,128], index: 1, kind: input, shape index: {}]
  %s2 = inlined_call_operand.vmem [shape: f32[1,128], index: 2, kind: input, shape index: {}]
  %s3 = inlined_call_operand.vmem [shape: f32[1,128], index: 3, kind: input, shape index: {}]
  %s4 = inlined_call_operand.vmem [shape: f32[2,16,128], index: 4, kind: output, shape index: {}]
  %s5 = sld [smem:[#allocation0]]
  $region49: #{basic_block_forward.5} parent=0
    _
  %s7 = ssub.s32 1, %s5
  %s8 = scalar_select 0, %s7, %s5
  loop: start=0, step=1, limit=4
  $region2: #{basic_block_forward.5} parent=0 // loop_pre_header
    _
  $region3: #{basic_block_forward.5} parent=0 // loop_header
    %s10 = sphi 0, %s14
    %p11 = scmp.ge.s32.totalorder %s10, 4
    %s20 = sphi 0, %s22
    %s23 = sphi 0, %s20
    %s24 = sphi 0, %s23
    %s40 = sphi 0, %s24
    %s46 = sphi 0, %s48
    %s49 = sphi 0, %s46
    %s50 = sphi 0, %s49
    %s66 = sphi 0, %s50
    %s70 = sphi 0, %s70
    %s72 = sphi 0, %s70
    %s73 = sphi 0, %s72
    %s87 = sphi 0, %s73
    %s91 = sphi 0, %s91
    %s93 = sphi 0, %s91
    %s94 = sphi 0, %s93
    %s108 = sphi 0, %s94
    %s114 = sphi 0, %s116
    %s117 = sphi 0, %s114
    %s118 = sphi 0, %s117
    %s134 = sphi 0, %s118
  $region4: #{basic_block_forward.5} parent=0 // loop_header_branch
    %13 = sbr.rel (%p11) target = $region8
  $region5: #{basic_block_forward.5} parent=0 // loop_body
    %s15 = ssub.s32 %s10, 1
    %s16 = ssub.s32 %s10, 2
    %s17 = sadd.s32 %s10, 1
    %s18 = ssub.s32 %s10, %s17
    %p19 = scmp.eq.s32.totalorder %s18, 0
    %s21 = sadd.s32 %s20, 1
    %s22 = scalar_select %p19, %s20, %s21
    %p25 = pneg %p19
    %p26 = scmp.eq.s32.totalorder %s10, 1
    %p27 = por %p25, %p26
    %p28 = scmp.ne.s32.totalorder %s20, %s23
    %p29 = scmp.eq.s32.totalorder %s10, 0
    %p30 = por %p28, %p29
    %p31 = scmp.ne.s32.totalorder %s20, %s23
    %p32 = scmp.eq.s32.totalorder %s15, 1
    %p33 = por %p31, %p32
    %p34 = scmp.ne.s32.totalorder %s23, %s24
    %p35 = scmp.eq.s32.totalorder %s15, 0
    %p36 = por %p34, %p35
    %p37 = scmp.ne.s32.totalorder %s23, %s24
    %p38 = scmp.eq.s32.totalorder %s16, 1
    %p39 = por %p37, %p38
    %p41 = scmp.ne.s32.totalorder %s24, %s40
    %p42 = scmp.eq.s32.totalorder %s16, 0
    %p43 = por %p41, %p42
    %s44 = ssub.s32 %s10, %s17
    %p45 = scmp.eq.s32.totalorder %s44, 0
    %s47 = sadd.s32 %s46, 1
    %s48 = scalar_select %p45, %s46, %s47
    %p51 = pneg %p45
    %p52 = scmp.eq.s32.totalorder %s10, 1
    %p53 = por %p51, %p52
    %p54 = scmp.ne.s32.totalorder %s46, %s49
    %p55 = scmp.eq.s32.totalorder %s10, 0
    %p56 = por %p54, %p55
    %p57 = scmp.ne.s32.totalorder %s46, %s49
    %p58 = scmp.eq.s32.totalorder %s15, 1
    %p59 = por %p57, %p58
    %p60 = scmp.ne.s32.totalorder %s49, %s50
    %p61 = scmp.eq.s32.totalorder %s15, 0
    %p62 = por %p60, %p61
    %p63 = scmp.ne.s32.totalorder %s49, %s50
    %p64 = scmp.eq.s32.totalorder %s16, 1
    %p65 = por %p63, %p64
    %p67 = scmp.ne.s32.totalorder %s50, %s66
    %p68 = scmp.eq.s32.totalorder %s16, 0
    %p69 = por %p67, %p68
    %s71 = sadd.s32 %s70, 1
    %p74 = scmp.eq.s32.totalorder %s10, 1
    %p75 = scmp.ne.s32.totalorder %s70, %s72
    %p76 = scmp.eq.s32.totalorder %s10, 0
    %p77 = por %p75, %p76
    %p78 = scmp.ne.s32.totalorder %s70, %s72
    %p79 = scmp.eq.s32.totalorder %s15, 1
    %p80 = por %p78, %p79
    %p81 = scmp.ne.s32.totalorder %s72, %s73
    %p82 = scmp.eq.s32.totalorder %s15, 0
    %p83 = por %p81, %p82
    %p84 = scmp.ne.s32.totalorder %s72, %s73
    %p85 = scmp.eq.s32.totalorder %s16, 1
    %p86 = por %p84, %p85
    %p88 = scmp.ne.s32.totalorder %s73, %s87
    %p89 = scmp.eq.s32.totalorder %s16, 0
    %p90 = por %p88, %p89
    %s92 = sadd.s32 %s91, 1
    %p95 = scmp.eq.s32.totalorder %s10, 1
    %p96 = scmp.ne.s32.totalorder %s91, %s93
    %p97 = scmp.eq.s32.totalorder %s10, 0
    %p98 = por %p96, %p97
    %p99 = scmp.ne.s32.totalorder %s91, %s93
    %p100 = scmp.eq.s32.totalorder %s15, 1
    %p101 = por %p99, %p100
    %p102 = scmp.ne.s32.totalorder %s93, %s94
    %p103 = scmp.eq.s32.totalorder %s15, 0
    %p104 = por %p102, %p103
    %p105 = scmp.ne.s32.totalorder %s93, %s94
    %p106 = scmp.eq.s32.totalorder %s16, 1
    %p107 = por %p105, %p106
    %p109 = scmp.ne.s32.totalorder %s94, %s108
    %p110 = scmp.eq.s32.totalorder %s16, 0
    %p111 = por %p109, %p110
    %s112 = ssub.s32 %s10, %s17
    %p113 = scmp.eq.s32.totalorder %s112, 0
    %s115 = sadd.s32 %s114, 1
    %s116 = scalar_select %p113, %s114, %s115
    %p119 = pneg %p113
    %p120 = scmp.eq.s32.totalorder %s10, 1
    %p121 = por %p119, %p120
    %p122 = scmp.ne.s32.totalorder %s114, %s117
    %p123 = scmp.eq.s32.totalorder %s10, 0
    %p124 = por %p122, %p123
    %p125 = scmp.ne.s32.totalorder %s114, %s117
    %p126 = scmp.eq.s32.totalorder %s15, 1
    %p127 = por %p125, %p126
    %p128 = scmp.ne.s32.totalorder %s117, %s118
    %p129 = scmp.eq.s32.totalorder %s15, 0
    %p130 = por %p128, %p129
    %p131 = scmp.ne.s32.totalorder %s117, %s118
    %p132 = scmp.eq.s32.totalorder %s16, 1
    %p133 = por %p131, %p132
    %p135 = scmp.ne.s32.totalorder %s118, %s134
    %p136 = scmp.eq.s32.totalorder %s16, 0
    %p137 = por %p135, %p136
    %p138 = scmp.le.s32.totalorder 1, %s10
    %p139 = scmp.lt.s32.totalorder %s10, 3
    %p140 = pnand %p138, %p139
    %p141 = pneg %p140
    // Predicated region
    $region9: #{basic_block_forward.5} parent=5 // pred_check
      _
    $region10: #{basic_block_forward.5} parent=5 // pred_check_branch
      %143 = sbr.rel (%p140) target = $region12
    $region11: #{basic_block_forward.5} parent=5 // pred_region
      %s144 = ssub.s32 %s10, 1
      // Predicated region
      $region13: #{basic_block_forward.5} parent=11 // pred_check
        %p145 = pneg %p83
      $region14: #{basic_block_forward.5} parent=11 // pred_check_branch
        %147 = sbr.rel (%p145) target = $region16
      $region15: #{basic_block_forward.5} parent=11 // pred_region
        _
      $region16: #{basic_block_forward.5} parent=11 // pred_fallthru
        _
      // Predicated region
      $region17: #{basic_block_forward.5} parent=11 // pred_check
        %p148 = pneg %p104
      $region18: #{basic_block_forward.5} parent=11 // pred_check_branch
        %150 = sbr.rel (%p148) target = $region20
      $region19: #{basic_block_forward.5} parent=11 // pred_region
        _
      $region20: #{basic_block_forward.5} parent=11 // pred_fallthru
        _
    $region12: #{basic_block_forward.5} parent=5 // pred_fallthru
      _
    %p151 = scmp.lt.s32.totalorder %s10, 2
    // Predicated region
    $region21: #{basic_block_forward.5} parent=5 // pred_check
      %p152 = pneg %p151
    $region22: #{basic_block_forward.5} parent=5 // pred_check_branch
      %154 = sbr.rel (%p152) target = $region24
    $region23: #{basic_block_forward.5} parent=5 // pred_region
      // Predicated region
      $region25: #{basic_block_forward.5} parent=23 // pred_check
        %p155 = pneg %p30
      $region26: #{basic_block_forward.5} parent=23 // pred_check_branch
        %157 = sbr.rel (%p155) target = $region28
      $region27: #{basic_block_forward.5} parent=23 // pred_region
        %p158 = scmp.lt.s32.totalorder %s10, 1
        %s159 = scalar_select %p158, %s10, 1
        %s160 = smul.addr %s159, 2
        %s161 = smul.addr %s160, 4
        %s162 = scalar_lea.vmem %s0, %s161
      $region28: #{basic_block_forward.5} parent=23 // pred_fallthru
        _
      // Predicated region
      $region29: #{basic_block_forward.5} parent=23 // pred_check
        %p163 = pneg %p56
      $region30: #{basic_block_forward.5} parent=23 // pred_check_branch
        %165 = sbr.rel (%p163) target = $region32
      $region31: #{basic_block_forward.5} parent=23 // pred_region
        %p166 = scmp.lt.s32.totalorder %s10, 1
        %s167 = scalar_select %p166, %s10, 1
        %s168 = smul.addr %s167, 2
        %s169 = smul.addr %s168, 8
        %s170 = scalar_lea.vmem %s1, %s169
      $region32: #{basic_block_forward.5} parent=23 // pred_fallthru
        _
    $region24: #{basic_block_forward.5} parent=5 // pred_fallthru
      _
    %p171 = scmp.le.s32.totalorder 1, %s10
    %p172 = scmp.lt.s32.totalorder %s10, 3
    %p173 = pnand %p171, %p172
    %p174 = pneg %p173
    // Predicated region
    $region33: #{basic_block_forward.5} parent=5 // pred_check
      _
    $region34: #{basic_block_forward.5} parent=5 // pred_check_branch
      %176 = sbr.rel (%p173) target = $region36
    $region35: #{basic_block_forward.5} parent=5 // pred_region
      %s177 = ssub.s32 %s10, 1
      %p178 = scmp.lt.s32.totalorder %s15, 1
      %s179 = scalar_select %p178, %s15, 1
      %s180 = smul.addr %s179, 2
      %s181 = smul.addr %s180, 4
      %s182 = scalar_lea.vmem %s0, %s181
      %p183 = pneg %p36
      %p184 = pneg %p33
      %p185 = scmp.lt.s32.totalorder %s15, 1
      %s186 = scalar_select %p185, %s15, 1
      %s187 = smul.addr %s186, 2
      %s188 = smul.addr %s187, 8
      %s189 = scalar_lea.vmem %s1, %s188
      %p190 = pneg %p62
      %p191 = pneg %p59
      %p192 = pneg %p83
      %p193 = pneg %p80
      %p194 = pneg %p104
      %p195 = pneg %p101
      %p196 = pneg %p130
      %p197 = pneg %p127
      %p198 = scmp.lt.s32.totalorder %s15, 1
      %s199 = scalar_select %p198, %s15, 1
      %s200 = smul.addr %s199, 2
      %s201 = smul.addr %s200, 8
      %s202 = scalar_lea.vmem %s4, %s201
      %p203 = scmp.lt.s32.totalorder %s15, 1
      %s204 = scalar_select %p203, %s15, 1
      %s205 = smul.addr %s204, 2
      %s206 = smul.addr %s205, 4
      %s207 = scalar_lea.vmem %s0, %s206
      %p208 = scmp.lt.s32.totalorder %s15, 1
      %s209 = scalar_select %p208, %s15, 1
      %s210 = smul.addr %s209, 2
      %s211 = smul.addr %s210, 8
      %s212 = scalar_lea.vmem %s1, %s211
      %p213 = scmp.lt.s32.totalorder %s15, 1
      %s214 = scalar_select %p213, %s15, 1
      %s215 = smul.addr %s214, 2
      %s216 = smul.addr %s215, 8
      %s217 = scalar_lea.vmem %s4, %s216
      %v218 = vld [vmem:[%s207] sm:$0xf]
      %v219 = vld [vmem:[%s207 + $0x4] sm:$0xf]
      %v220 = vunpack.c.l.bf16 %v218
      %v221 = vunpack.c.l.bf16 %v219
      %v222 = vld [vmem:[%s2] sm:$0x1]
      %v224 = vperm.slane %v222, 0
      %v226 = vmul.f32 %v220, %v224
      %v227 = vmul.f32 %v221, %v224
      %v228 = vld [vmem:[%s3] sm:$0x1]
      %v230 = vperm.slane %v228, 0
      %v232 = vadd.f32 %v226, %v230
      %v233 = vadd.f32 %v227, %v230
      %v234 = vld [vmem:[%s212] sm:$0xff]
      %v235 = vld [vmem:[%s212 + $0x8] sm:$0xff]
      %v236 = vadd.f32 %v232, %v234
      %v237 = vadd.f32 %v233, %v235
      %v238 = vmax.f32 %v236, 0.0
      %v239 = vmax.f32 %v237, 0.0
      %240 = vst [vmem:[%s217] sm:$0xff] %v238
      %241 = vst [vmem:[%s217 + $0x8] sm:$0xff] %v239
      %p242 = scmp.lt.s32.totalorder %s15, 1
      %s243 = scalar_select %p242, %s15, 1
      %s244 = smul.addr %s243, 2
      %s245 = smul.addr %s244, 8
      %s246 = scalar_lea.vmem %s4, %s245
      // Predicated region
      $region37: #{basic_block_forward.5} parent=35 // pred_check
        %p247 = pneg %p127
      $region38: #{basic_block_forward.5} parent=35 // pred_check_branch
        %249 = sbr.rel (%p247) target = $region40
      $region39: #{basic_block_forward.5} parent=35 // pred_region
        _
      $region40: #{basic_block_forward.5} parent=35 // pred_fallthru
        _
    $region36: #{basic_block_forward.5} parent=5 // pred_fallthru
      _
    %p250 = scmp.le.s32.totalorder 2, %s10
    // Predicated region
    $region41: #{basic_block_forward.5} parent=5 // pred_check
      %p251 = pneg %p250
    $region42: #{basic_block_forward.5} parent=5 // pred_check_branch
      %253 = sbr.rel (%p251) target = $region44
    $region43: #{basic_block_forward.5} parent=5 // pred_region
      %s254 = ssub.s32 %s10, 2
      // Predicated region
      $region45: #{basic_block_forward.5} parent=43 // pred_check
        %p255 = pneg %p133
      $region46: #{basic_block_forward.5} parent=43 // pred_check_branch
        %257 = sbr.rel (%p255) target = $region48
      $region47: #{basic_block_forward.5} parent=43 // pred_region
        %p258 = scmp.lt.s32.totalorder %s16, 1
        %s259 = scalar_select %p258, %s16, 1
        %s260 = smul.addr %s259, 2
        %s261 = smul.addr %s260, 8
        %s262 = scalar_lea.vmem %s4, %s261
      $region48: #{basic_block_forward.5} parent=43 // pred_fallthru
        _
    $region44: #{basic_block_forward.5} parent=5 // pred_fallthru
      _
  $region6: #{basic_block_forward.5} parent=0 // loop_footer
    %s14 = sadd.s32 1, %s10
  $region7: #{basic_block_forward.5} parent=0 // loop_footer_branch
    %9 = sbr.rel target = $region3
  $region8: #{basic_block_forward.5} parent=0 // loop_exit
    _

// kernel: basic_block_forward.4
$region0: #{basic_block_forward.4}
  #allocation0 [shape = 'u32[]', space=smem, size = 0x4, offset = 0x4, fixed_abs, tag = 'smem constant byte address 0x4 - core index']
  #allocation1 [shape = 'u32[72,128]{1,0:T(1,128)}', space=vmem, size = 0x9000, scoped, tag = 'internal scratch']
  %s0 = inlined_call_operand.vmem [shape: bf16[2,16,128], index: 0, kind: input, shape index: {}]
  %s1 = inlined_call_operand.vmem [shape: f32[1,128], index: 1, kind: input, shape index: {}]
  %s2 = inlined_call_operand.vmem [shape: f32[1,128], index: 2, kind: input, shape index: {}]
  %s3 = inlined_call_operand.vmem [shape: bf16[3,128,128], index: 3, kind: input, shape index: {}]
  %s4 = inlined_call_operand.vmem [shape: bf16[2,16,128], index: 4, kind: output, shape index: {0}]
  %s5 = inlined_call_operand.vmem [shape: f32[2,2,128], index: 5, kind: output, shape index: {1}]
  %6 = xla_tuple %s4, %s5
  %s7 = sld [smem:[#allocation0]]
  $region57: #{basic_block_forward.4} parent=0
    _
  %s9 = ssub.s32 1, %s7
  %s10 = scalar_select 0, %s9, %s7
  loop: start=0, step=1, limit=4
  $region2: #{basic_block_forward.4} parent=0 // loop_pre_header
    _
  $region3: #{basic_block_forward.4} parent=0 // loop_header
    %s12 = sphi 0, %s16
    %p13 = scmp.ge.s32.totalorder %s12, 4
    %s22 = sphi 0, %s24
    %s25 = sphi 0, %s22
    %s26 = sphi 0, %s25
    %s42 = sphi 0, %s26
    %s46 = sphi 0, %s46
    %s48 = sphi 0, %s46
    %s49 = sphi 0, %s48
    %s63 = sphi 0, %s49
    %s67 = sphi 0, %s67
    %s69 = sphi 0, %s67
    %s70 = sphi 0, %s69
    %s84 = sphi 0, %s70
    %s88 = sphi 0, %s88
    %s90 = sphi 0, %s88
    %s91 = sphi 0, %s90
    %s105 = sphi 0, %s91
    %s111 = sphi 0, %s113
    %s114 = sphi 0, %s111
    %s115 = sphi 0, %s114
    %s131 = sphi 0, %s115
    %s137 = sphi 0, %s139
    %s140 = sphi 0, %s137
    %s141 = sphi 0, %s140
    %s157 = sphi 0, %s141
  $region4: #{basic_block_forward.4} parent=0 // loop_header_branch
    %15 = sbr.rel (%p13) target = $region8
  $region5: #{basic_block_forward.4} parent=0 // loop_body
    %s17 = ssub.s32 %s12, 1
    %s18 = ssub.s32 %s12, 2
    %s19 = sadd.s32 %s12, 1
    %s20 = ssub.s32 %s12, %s19
    %p21 = scmp.eq.s32.totalorder %s20, 0
    %s23 = sadd.s32 %s22, 1
    %s24 = scalar_select %p21, %s22, %s23
    %p27 = pneg %p21
    %p28 = scmp.eq.s32.totalorder %s12, 1
    %p29 = por %p27, %p28
    %p30 = scmp.ne.s32.totalorder %s22, %s25
    %p31 = scmp.eq.s32.totalorder %s12, 0
    %p32 = por %p30, %p31
    %p33 = scmp.ne.s32.totalorder %s22, %s25
    %p34 = scmp.eq.s32.totalorder %s17, 1
    %p35 = por %p33, %p34
    %p36 = scmp.ne.s32.totalorder %s25, %s26
    %p37 = scmp.eq.s32.totalorder %s17, 0
    %p38 = por %p36, %p37
    %p39 = scmp.ne.s32.totalorder %s25, %s26
    %p40 = scmp.eq.s32.totalorder %s18, 1
    %p41 = por %p39, %p40
    %p43 = scmp.ne.s32.totalorder %s26, %s42
    %p44 = scmp.eq.s32.totalorder %s18, 0
    %p45 = por %p43, %p44
    %s47 = sadd.s32 %s46, 1
    %p50 = scmp.eq.s32.totalorder %s12, 1
    %p51 = scmp.ne.s32.totalorder %s46, %s48
    %p52 = scmp.eq.s32.totalorder %s12, 0
    %p53 = por %p51, %p52
    %p54 = scmp.ne.s32.totalorder %s46, %s48
    %p55 = scmp.eq.s32.totalorder %s17, 1
    %p56 = por %p54, %p55
    %p57 = scmp.ne.s32.totalorder %s48, %s49
    %p58 = scmp.eq.s32.totalorder %s17, 0
    %p59 = por %p57, %p58
    %p60 = scmp.ne.s32.totalorder %s48, %s49
    %p61 = scmp.eq.s32.totalorder %s18, 1
    %p62 = por %p60, %p61
    %p64 = scmp.ne.s32.totalorder %s49, %s63
    %p65 = scmp.eq.s32.totalorder %s18, 0
    %p66 = por %p64, %p65
    %s68 = sadd.s32 %s67, 1
    %p71 = scmp.eq.s32.totalorder %s12, 1
    %p72 = scmp.ne.s32.totalorder %s67, %s69
    %p73 = scmp.eq.s32.totalorder %s12, 0
    %p74 = por %p72, %p73
    %p75 = scmp.ne.s32.totalorder %s67, %s69
    %p76 = scmp.eq.s32.totalorder %s17, 1
    %p77 = por %p75, %p76
    %p78 = scmp.ne.s32.totalorder %s69, %s70
    %p79 = scmp.eq.s32.totalorder %s17, 0
    %p80 = por %p78, %p79
    %p81 = scmp.ne.s32.totalorder %s69, %s70
    %p82 = scmp.eq.s32.totalorder %s18, 1
    %p83 = por %p81, %p82
    %p85 = scmp.ne.s32.totalorder %s70, %s84
    %p86 = scmp.eq.s32.totalorder %s18, 0
    %p87 = por %p85, %p86
    %s89 = sadd.s32 %s88, 1
    %p92 = scmp.eq.s32.totalorder %s12, 1
    %p93 = scmp.ne.s32.totalorder %s88, %s90
    %p94 = scmp.eq.s32.totalorder %s12, 0
    %p95 = por %p93, %p94
    %p96 = scmp.ne.s32.totalorder %s88, %s90
    %p97 = scmp.eq.s32.totalorder %s17, 1
    %p98 = por %p96, %p97
    %p99 = scmp.ne.s32.totalorder %s90, %s91
    %p100 = scmp.eq.s32.totalorder %s17, 0
    %p101 = por %p99, %p100
    %p102 = scmp.ne.s32.totalorder %s90, %s91
    %p103 = scmp.eq.s32.totalorder %s18, 1
    %p104 = por %p102, %p103
    %p106 = scmp.ne.s32.totalorder %s91, %s105
    %p107 = scmp.eq.s32.totalorder %s18, 0
    %p108 = por %p106, %p107
    %s109 = ssub.s32 %s12, %s19
    %p110 = scmp.eq.s32.totalorder %s109, 0
    %s112 = sadd.s32 %s111, 1
    %s113 = scalar_select %p110, %s111, %s112
    %p116 = pneg %p110
    %p117 = scmp.eq.s32.totalorder %s12, 1
    %p118 = por %p116, %p117
    %p119 = scmp.ne.s32.totalorder %s111, %s114
    %p120 = scmp.eq.s32.totalorder %s12, 0
    %p121 = por %p119, %p120
    %p122 = scmp.ne.s32.totalorder %s111, %s114
    %p123 = scmp.eq.s32.totalorder %s17, 1
    %p124 = por %p122, %p123
    %p125 = scmp.ne.s32.totalorder %s114, %s115
    %p126 = scmp.eq.s32.totalorder %s17, 0
    %p127 = por %p125, %p126
    %p128 = scmp.ne.s32.totalorder %s114, %s115
    %p129 = scmp.eq.s32.totalorder %s18, 1
    %p130 = por %p128, %p129
    %p132 = scmp.ne.s32.totalorder %s115, %s131
    %p133 = scmp.eq.s32.totalorder %s18, 0
    %p134 = por %p132, %p133
    %s135 = ssub.s32 %s12, %s19
    %p136 = scmp.eq.s32.totalorder %s135, 0
    %s138 = sadd.s32 %s137, 1
    %s139 = scalar_select %p136, %s137, %s138
    %p142 = pneg %p136
    %p143 = scmp.eq.s32.totalorder %s12, 1
    %p144 = por %p142, %p143
    %p145 = scmp.ne.s32.totalorder %s137, %s140
    %p146 = scmp.eq.s32.totalorder %s12, 0
    %p147 = por %p145, %p146
    %p148 = scmp.ne.s32.totalorder %s137, %s140
    %p149 = scmp.eq.s32.totalorder %s17, 1
    %p150 = por %p148, %p149
    %p151 = scmp.ne.s32.totalorder %s140, %s141
    %p152 = scmp.eq.s32.totalorder %s17, 0
    %p153 = por %p151, %p152
    %p154 = scmp.ne.s32.totalorder %s140, %s141
    %p155 = scmp.eq.s32.totalorder %s18, 1
    %p156 = por %p154, %p155
    %p158 = scmp.ne.s32.totalorder %s141, %s157
    %p159 = scmp.eq.s32.totalorder %s18, 0
    %p160 = por %p158, %p159
    %p161 = scmp.le.s32.totalorder 1, %s12
    %p162 = scmp.lt.s32.totalorder %s12, 3
    %p163 = pnand %p161, %p162
    %p164 = pneg %p163
    // Predicated region
    $region9: #{basic_block_forward.4} parent=5 // pred_check
      _
    $region10: #{basic_block_forward.4} parent=5 // pred_check_branch
      %166 = sbr.rel (%p163) target = $region12
    $region11: #{basic_block_forward.4} parent=5 // pred_region
      %s167 = ssub.s32 %s12, 1
      // Predicated region
      $region13: #{basic_block_forward.4} parent=11 // pred_check
        %p168 = pneg %p59
      $region14: #{basic_block_forward.4} parent=11 // pred_check_branch
        %170 = sbr.rel (%p168) target = $region16
      $region15: #{basic_block_forward.4} parent=11 // pred_region
        _
      $region16: #{basic_block_forward.4} parent=11 // pred_fallthru
        _
      // Predicated region
      $region17: #{basic_block_forward.4} parent=11 // pred_check
        %p171 = pneg %p80
      $region18: #{basic_block_forward.4} parent=11 // pred_check_branch
        %173 = sbr.rel (%p171) target = $region20
      $region19: #{basic_block_forward.4} parent=11 // pred_region
        _
      $region20: #{basic_block_forward.4} parent=11 // pred_fallthru
        _
      // Predicated region
      $region21: #{basic_block_forward.4} parent=11 // pred_check
        %p174 = pneg %p101
      $region22: #{basic_block_forward.4} parent=11 // pred_check_branch
        %176 = sbr.rel (%p174) target = $region24
      $region23: #{basic_block_forward.4} parent=11 // pred_region
        _
      $region24: #{basic_block_forward.4} parent=11 // pred_fallthru
        _
    $region12: #{basic_block_forward.4} parent=5 // pred_fallthru
      _
    %p177 = scmp.lt.s32.totalorder %s12, 2
    // Predicated region
    $region25: #{basic_block_forward.4} parent=5 // pred_check
      %p178 = pneg %p177
    $region26: #{basic_block_forward.4} parent=5 // pred_check_branch
      %180 = sbr.rel (%p178) target = $region28
    $region27: #{basic_block_forward.4} parent=5 // pred_region
      // Predicated region
      $region29: #{basic_block_forward.4} parent=27 // pred_check
        %p181 = pneg %p32
      $region30: #{basic_block_forward.4} parent=27 // pred_check_branch
        %183 = sbr.rel (%p181) target = $region32
      $region31: #{basic_block_forward.4} parent=27 // pred_region
        %p184 = scmp.lt.s32.totalorder %s12, 1
        %s185 = scalar_select %p184, %s12, 1
        %s186 = smul.addr %s185, 2
        %s187 = smul.addr %s186, 4
        %s188 = scalar_lea.vmem %s0, %s187
      $region32: #{basic_block_forward.4} parent=27 // pred_fallthru
        _
    $region28: #{basic_block_forward.4} parent=5 // pred_fallthru
      _
    %p189 = scmp.le.s32.totalorder 1, %s12
    %p190 = scmp.lt.s32.totalorder %s12, 3
    %p191 = pnand %p189, %p190
    %p192 = pneg %p191
    // Predicated region
    $region33: #{basic_block_forward.4} parent=5 // pred_check
      _
    $region34: #{basic_block_forward.4} parent=5 // pred_check_branch
      %194 = sbr.rel (%p191) target = $region36
    $region35: #{basic_block_forward.4} parent=5 // pred_region
      %s195 = ssub.s32 %s12, 1
      %p196 = scmp.lt.s32.totalorder %s17, 1
      %s197 = scalar_select %p196, %s17, 1
      %s198 = smul.addr %s197, 2
      %s199 = smul.addr %s198, 4
      %s200 = scalar_lea.vmem %s0, %s199
      %p201 = pneg %p38
      %p202 = pneg %p35
      %p203 = pneg %p59
      %p204 = pneg %p56
      %p205 = pneg %p80
      %p206 = pneg %p77
      %p207 = pneg %p101
      %p208 = pneg %p98
      %p209 = pneg %p127
      %p210 = pneg %p124
      %p211 = scmp.lt.s32.totalorder %s17, 1
      %s212 = scalar_select %p211, %s17, 1
      %s213 = smul.addr %s212, 2
      %s214 = smul.addr %s213, 4
      %s215 = scalar_lea.vmem %s4, %s214
      %p216 = pneg %p153
      %p217 = pneg %p150
      %p218 = scmp.lt.s32.totalorder %s17, 1
      %s219 = scalar_select %p218, %s17, 1
      %s220 = smul.addr %s219, 2
      %s221 = scalar_lea.vmem %s5, %s220
      %p222 = scmp.lt.s32.totalorder %s17, 1
      %s223 = scalar_select %p222, %s17, 1
      %s224 = smul.addr %s223, 2
      %s225 = smul.addr %s224, 4
      %s226 = scalar_lea.vmem %s0, %s225
      %p227 = scmp.lt.s32.totalorder %s17, 1
      %s228 = scalar_select %p227, %s17, 1
      %s229 = smul.addr %s228, 2
      %s230 = smul.addr %s229, 4
      %s231 = scalar_lea.vmem %s4, %s230
      %p232 = scmp.lt.s32.totalorder %s17, 1
      %s233 = scalar_select %p232, %s17, 1
      %s234 = smul.addr %s233, 2
      %s235 = scalar_lea.vmem %s5, %s234
      %v237 = vld [vmem:[%s226] sm:$0xf]
      %v238 = vld [vmem:[%s226 + $0x4] sm:$0xf]
      %v239 = vunpack.c.l.bf16 %v237
      %v240 = vunpack.c.l.bf16 %v238
      %v241 = vld [vmem:[%s1] sm:$0x1]
      %v243 = vperm.slane %v241, 0
      %v245 = vmul.f32 %v239, %v243
      %v246 = vmul.f32 %v240, %v243
      %v247 = vld [vmem:[%s2] sm:$0x1]
      %v249 = vperm.slane %v247, 0
      %v251 = vadd.f32 %v245, %v249
      %v252 = vadd.f32 %v246, %v249
      %v253 = vmax.f32 %v251, 0.0
      %v254 = vmax.f32 %v252, 0.0
      %v255 = vpack.c.bf16 %v253, %v253
      %v256 = vpack.c.bf16 %v254, %v254
      %s257 = scalar_lea.vmem %s3, 64
      %v258 = vld [vmem:[%s257] sm:$0xf]
      %v259 = vld [vmem:[%s257 + $0x4] sm:$0xf]
      %v260 = vld [vmem:[%s257 + $0x8] sm:$0xf]
      %v261 = vld [vmem:[%s257 + $0xc] sm:$0xf]
      %v262 = vld [vmem:[%s257 + $0x10] sm:$0xf]
      %v263 = vld [vmem:[%s257 + $0x14] sm:$0xf]
      %v264 = vld [vmem:[%s257 + $0x18] sm:$0xf]
      %v265 = vld [vmem:[%s257 + $0x1c] sm:$0xf]
      %v266 = vld [vmem:[%s257 + $0x20] sm:$0xf]
      %v267 = vld [vmem:[%s257 + $0x24] sm:$0xf]
      %v268 = vld [vmem:[%s257 + $0x28] sm:$0xf]
      %v269 = vld [vmem:[%s257 + $0x2c] sm:$0xf]
      %v270 = vld [vmem:[%s257 + $0x30] sm:$0xf]
      %v271 = vld [vmem:[%s257 + $0x34] sm:$0xf]
      %v272 = vld [vmem:[%s257 + $0x38] sm:$0xf]
      %v273 = vld [vmem:[%s257 + $0x3c] sm:$0xf]
      %v276 = vunpack.c.l.b16 %v255
      %v277 = vunpack.c.l.b16 %v256
      %v278 = vpack.c.b16 %v277, %v276
      %v280 = vshrl.u32 %v278, 16
      %v282 = vrot.slane %v280, 7
      %v283 = vshll.u32 %v278, 16
      %v285 = vor.u32 %v282, %v283
      %vm287 = vcmask 1040384
      %vm288 = vsmask.f32 256
      %vm289 = vmand %vm287, %vm288
      %v290 = vsel %vm289, 0, %v285
      %v291 = vld [vmem:[%s3] sm:$0xf]
      %v292 = vld [vmem:[%s3 + $0x4] sm:$0xf]
      %v293 = vld [vmem:[%s3 + $0x8] sm:$0xf]
      %v294 = vld [vmem:[%s3 + $0xc] sm:$0xf]
      %v295 = vld [vmem:[%s3 + $0x10] sm:$0xf]
      %v296 = vld [vmem:[%s3 + $0x14] sm:$0xf]
      %v297 = vld [vmem:[%s3 + $0x18] sm:$0xf]
      %v298 = vld [vmem:[%s3 + $0x1c] sm:$0xf]
      %v299 = vld [vmem:[%s3 + $0x20] sm:$0xf]
      %v300 = vld [vmem:[%s3 + $0x24] sm:$0xf]
      %v301 = vld [vmem:[%s3 + $0x28] sm:$0xf]
      %v302 = vld [vmem:[%s3 + $0x2c] sm:$0xf]
      %v303 = vld [vmem:[%s3 + $0x30] sm:$0xf]
      %v304 = vld [vmem:[%s3 + $0x34] sm:$0xf]
      %v305 = vld [vmem:[%s3 + $0x38] sm:$0xf]
      %v306 = vld [vmem:[%s3 + $0x3c] sm:$0xf]
      %v323 = vunpack.c.l.b16 %v291
      %v324 = vunpack.c.l.b16 %v292
      %v325 = vunpack.c.l.b16 %v293
      %v326 = vunpack.c.l.b16 %v294
      %v327 = vunpack.c.l.b16 %v295
      %v328 = vunpack.c.l.b16 %v296
      %v329 = vunpack.c.l.b16 %v297
      %v330 = vunpack.c.l.b16 %v298
      %v331 = vunpack.c.l.b16 %v299
      %v332 = vunpack.c.l.b16 %v300
      %v333 = vunpack.c.l.b16 %v301
      %v334 = vunpack.c.l.b16 %v302
      %v335 = vunpack.c.l.b16 %v303
      %v336 = vunpack.c.l.b16 %v304
      %v337 = vunpack.c.l.b16 %v305
      %v338 = vunpack.c.l.b16 %v306
      %v339 = vpack.c.b16 %v324, %v323
      %v340 = vpack.c.b16 %v326, %v325
      %v341 = vpack.c.b16 %v328, %v327
      %v342 = vpack.c.b16 %v330, %v329
      %v343 = vpack.c.b16 %v332, %v331
      %v344 = vpack.c.b16 %v334, %v333
      %v345 = vpack.c.b16 %v336, %v335
      %v346 = vpack.c.b16 %v338, %v337
      %355 = vmatpush.bf16.msra.mxu0 %v346
      %356 = vmatpush.bf16.msra.mxu0 %v345
      %357 = vmatpush.bf16.msra.mxu0 %v344
      %358 = vmatpush.bf16.msra.mxu0 %v343
      %359 = vmatpush.bf16.msra.mxu0 %v342
      %360 = vmatpush.bf16.msra.mxu0 %v341
      %361 = vmatpush.bf16.msra.mxu0 %v340
      %362 = vmatpush.bf16.msra.mxu0 %v339
      %363 = vmatmul.bf16.gmra.mxu0 %v290
      %v364 = vpop.f32.mrf.mxu0
      %v365 = vadd.f32 0.0, %v364
      %v366 = vpop.f32.mrf.mxu0
      %v367 = vadd.f32 0.0, %v366
      %368 = vdwg.mxu0
      %v386 = vunpack.c.l.b16 %v258
      %v387 = vunpack.c.l.b16 %v259
      %v388 = vunpack.c.l.b16 %v260
      %v389 = vunpack.c.l.b16 %v261
      %v390 = vunpack.c.l.b16 %v262
      %v391 = vunpack.c.l.b16 %v263
      %v392 = vunpack.c.l.b16 %v264
      %v393 = vunpack.c.l.b16 %v265
      %v394 = vunpack.c.l.b16 %v266
      %v395 = vunpack.c.l.b16 %v267
      %v396 = vunpack.c.l.b16 %v268
      %v397 = vunpack.c.l.b16 %v269
      %v398 = vunpack.c.l.b16 %v270
      %v399 = vunpack.c.l.b16 %v271
      %v400 = vunpack.c.l.b16 %v272
      %v401 = vunpack.c.l.b16 %v273
      %v402 = vpack.c.b16 %v387, %v386
      %v403 = vpack.c.b16 %v389, %v388
      %v404 = vpack.c.b16 %v391, %v390
      %v405 = vpack.c.b16 %v393, %v392
      %v406 = vpack.c.b16 %v395, %v394
      %v407 = vpack.c.b16 %v397, %v396
      %v408 = vpack.c.b16 %v399, %v398
      %v409 = vpack.c.b16 %v401, %v400
      %418 = vmatpush.bf16.msra.mxu0 %v409
      %419 = vmatpush.bf16.msra.mxu0 %v408
      %420 = vmatpush.bf16.msra.mxu0 %v407
      %421 = vmatpush.bf16.msra.mxu0 %v406
      %422 = vmatpush.bf16.msra.mxu0 %v405
      %423 = vmatpush.bf16.msra.mxu0 %v404
      %424 = vmatpush.bf16.msra.mxu0 %v403
      %425 = vmatpush.bf16.msra.mxu0 %v402
      %426 = vmatmul.bf16.gmra.mxu0 %v278
      %v427 = vpop.f32.mrf.mxu0
      %v428 = vadd.f32 %v365, %v427
      %v429 = vpop.f32.mrf.mxu0
      %v430 = vadd.f32 %v367, %v429
      %431 = vdwg.mxu0
      %v432 = vrot.slane %v283, 1
      %v433 = vor.u32 %v280, %v432
      %vm435 = vcmask 1047552
      %vm436 = vsmask.f32 7424
      %vm437 = vmand %vm435, %vm436
      %v438 = vsel %vm437, %v433, 0
      %s439 = scalar_lea.vmem %s3, 128
      %v440 = vld [vmem:[%s439] sm:$0xf]
      %v441 = vld [vmem:[%s439 + $0x4] sm:$0xf]
      %v442 = vld [vmem:[%s439 + $0x8] sm:$0xf]
      %v443 = vld [vmem:[%s439 + $0xc] sm:$0xf]
      %v444 = vld [vmem:[%s439 + $0x10] sm:$0xf]
      %v445 = vld [vmem:[%s439 + $0x14] sm:$0xf]
      %v446 = vld [vmem:[%s439 + $0x18] sm:$0xf]
      %v447 = vld [vmem:[%s439 + $0x1c] sm:$0xf]
      %v448 = vld [vmem:[%s439 + $0x20] sm:$0xf]
      %v449 = vld [vmem:[%s439 + $0x24] sm:$0xf]
      %v450 = vld [vmem:[%s439 + $0x28] sm:$0xf]
      %v451 = vld [vmem:[%s439 + $0x2c] sm:$0xf]
      %v452 = vld [vmem:[%s439 + $0x30] sm:$0xf]
      %v453 = vld [vmem:[%s439 + $0x34] sm:$0xf]
      %v454 = vld [vmem:[%s439 + $0x38] sm:$0xf]
      %v455 = vld [vmem:[%s439 + $0x3c] sm:$0xf]
      %v472 = vunpack.c.l.b16 %v440
      %v473 = vunpack.c.l.b16 %v441
      %v474 = vunpack.c.l.b16 %v442
      %v475 = vunpack.c.l.b16 %v443
      %v476 = vunpack.c.l.b16 %v444
      %v477 = vunpack.c.l.b16 %v445
      %v478 = vunpack.c.l.b16 %v446
      %v479 = vunpack.c.l.b16 %v447
      %v480 = vunpack.c.l.b16 %v448
      %v481 = vunpack.c.l.b16 %v449
      %v482 = vunpack.c.l.b16 %v450
      %v483 = vunpack.c.l.b16 %v451
      %v484 = vunpack.c.l.b16 %v452
      %v485 = vunpack.c.l.b16 %v453
      %v486 = vunpack.c.l.b16 %v454
      %v487 = vunpack.c.l.b16 %v455
      %v488 = vpack.c.b16 %v473, %v472
      %v489 = vpack.c.b16 %v475, %v474
      %v490 = vpack.c.b16 %v477, %v476
      %v491 = vpack.c.b16 %v479, %v478
      %v492 = vpack.c.b16 %v481, %v480
      %v493 = vpack.c.b16 %v483, %v482
      %v494 = vpack.c.b16 %v485, %v484
      %v495 = vpack.c.b16 %v487, %v486
      %504 = vmatpush.bf16.msra.mxu0 %v495
      %505 = vmatpush.bf16.msra.mxu0 %v494
      %506 = vmatpush.bf16.msra.mxu0 %v493
      %507 = vmatpush.bf16.msra.mxu0 %v492
      %508 = vmatpush.bf16.msra.mxu0 %v491
      %509 = vmatpush.bf16.msra.mxu0 %v490
      %510 = vmatpush.bf16.msra.mxu0 %v489
      %511 = vmatpush.bf16.msra.mxu0 %v488
      %512 = vmatmul.bf16.gmra.mxu0 %v438
      %v513 = vpop.f32.mrf.mxu0
      %v514 = vadd.f32 0.0, %v513
      %v515 = vpop.f32.mrf.mxu0
      %v516 = vadd.f32 0.0, %v515
      %517 = vdwg.mxu0
      %v518 = vadd.f32 %v428, %v514
      %v519 = vadd.f32 %v430, %v516
      %v520 = vpack.c.bf16 %v518, %v518
      %v521 = vpack.c.bf16 %v519, %v519
      %522 = vst [vmem:[%s231] sm:$0xf] %v520
      %523 = vst [vmem:[%s231 + $0x4] sm:$0xf] %v521
      %v524 = vunpack.c.l.bf16 %v520
      %v525 = vunpack.c.l.bf16 %v521
      %v526 = vadd.f32 %v524, %v525
      %v527 = vrot.slane %v526, 4
      %v528 = vadd.f32 %v526, %v527
      %v529 = vrot.slane %v528, 2
      %v530 = vadd.f32 %v528, %v529
      %v531 = vrot.slane %v530, 1
      %v532 = vadd.f32 %v530, %v531
      %v533 = vmul.f32 %v524, %v524
      %v534 = vmul.f32 %v525, %v525
      %v535 = vadd.f32 %v533, %v534
      %v536 = vrot.slane %v535, 4
      %v537 = vadd.f32 %v535, %v536
      %v538 = vrot.slane %v537, 2
      %v539 = vadd.f32 %v537, %v538
      %v540 = vrot.slane %v539, 1
      %v541 = vadd.f32 %v539, %v540
      %vm542 = vcmask 1040384
      %v543 = vsel %vm542, %v532, %v541
      %544 = vst [vmem:[%s235] sm:$0x3] %v543
      %p545 = scmp.lt.s32.totalorder %s17, 1
      %s546 = scalar_select %p545, %s17, 1
      %s547 = smul.addr %s546, 2
      %s548 = smul.addr %s547, 4
      %s549 = scalar_lea.vmem %s4, %s548
      %p550 = scmp.lt.s32.totalorder %s17, 1
      %s551 = scalar_select %p550, %s17, 1
      %s552 = smul.addr %s551, 2
      %s553 = scalar_lea.vmem %s5, %s552
      // Predicated region
      $region37: #{basic_block_forward.4} parent=35 // pred_check
        %p554 = pneg %p124
      $region38: #{basic_block_forward.4} parent=35 // pred_check_branch
        %556 = sbr.rel (%p554) target = $region40
      $region39: #{basic_block_forward.4} parent=35 // pred_region
        _
      $region40: #{basic_block_forward.4} parent=35 // pred_fallthru
        _
      // Predicated region
      $region41: #{basic_block_forward.4} parent=35 // pred_check
        %p557 = pneg %p150
      $region42: #{basic_block_forward.4} parent=35 // pred_check_branch
        %559 = sbr.rel (%p557) target = $region44
      $region43: #{basic_block_forward.4} parent=35 // pred_region
        _
      $region44: #{basic_block_forward.4} parent=35 // pred_fallthru
        _
    $region36: #{basic_block_forward.4} parent=5 // pred_fallthru
      _
    %p560 = scmp.le.s32.totalorder 2, %s12
    // Predicated region
    $region45: #{basic_block_forward.4} parent=5 // pred_check
      %p561 = pneg %p560
    $region46: #{basic_block_forward.4} parent=5 // pred_check_branch
      %563 = sbr.rel (%p561) target = $region48
    $region47: #{basic_block_forward.4} parent=5 // pred_region
      %s564 = ssub.s32 %s12, 2
      // Predicated region
      $region49: #{basic_block_forward.4} parent=47 // pred_check
        %p565 = pneg %p130
      $region50: #{basic_block_forward.4} parent=47 // pred_check_branch
        %567 = sbr.rel (%p565) target = $region52
      $region51: #{basic_block_forward.4} parent=47 // pred_region
        %p568 = scmp.lt.s32.totalorder %s18, 1
        %s569 = scalar_select %p568, %s18, 1
        %s570 = smul.addr %s569, 2
        %s571 = smul.addr %s570, 4
        %s572 = scalar_lea.vmem %s4, %s571
      $region52: #{basic_block_forward.4} parent=47 // pred_fallthru
        _
      // Predicated region
      $region53: #{basic_block_forward.4} parent=47 // pred_check
        %p573 = pneg %p156
      $region54: #{basic_block_forward.4} parent=47 // pred_check_branch
        %575 = sbr.rel (%p573) target = $region56
      $region55: #{basic_block_forward.4} parent=47 // pred_region
        %p576 = scmp.lt.s32.totalorder %s18, 1
        %s577 = scalar_select %p576, %s18, 1
        %s578 = smul.addr %s577, 2
        %s579 = scalar_lea.vmem %s5, %s578
      $region56: #{basic_block_forward.4} parent=47 // pred_fallthru
        _
    $region48: #{basic_block_forward.4} parent=5 // pred_fallthru
      _
  $region6: #{basic_block_forward.4} parent=0 // loop_footer
    %s16 = sadd.s32 1, %s12
  $region7: #{basic_block_forward.4} parent=0 // loop_footer_branch
    %11 = sbr.rel target = $region3
  $region8: #{basic_block_forward.4} parent=0 // loop_exit
    _

</llo_original>
